<compile_context>
chip_gen: v7x
topology: tpu7x:2x2x1
jax: 0.10.0
libtpu: 0.0.40
codegen_flags: <defaults>
</compile_context>

<pallas_src>
import math
import jax
import jax.numpy as jnp
import numpy as np
from jax import lax
from jax.experimental import pallas as pl
from jax.experimental.pallas import tpu as pltpu

# ---- model hyper-parameters (small, consistent with d_model/n_heads/d_ff) ----
D_MODEL = 32
N_HEADS = 4
D_K = D_MODEL // N_HEADS          # 8
D_FF = 64
LN_EPS = 1e-5
NEG_INF = -1e9
LANE = 128


def _layernorm(x, gamma, beta):
    mu = jnp.mean(x, axis=-1, keepdims=True)
    var = jnp.mean((x - mu) ** 2, axis=-1, keepdims=True)
    return (x - mu) * lax.rsqrt(var + LN_EPS) * gamma + beta


# ------------------------- in-kernel attention sub-layer -------------------------
def _attend(q, k, v, bias, x_res, w_o, b_o, gamma, beta):
    """Head-batched attention for ONE batch element.

    q:(Nq,D) f32   k,v:(Nkv,D) f32   bias:(Nq,Nkv) f32 additive mask bias
    x_res:(Nq,D)   w_o:(D,D) bf16    b_o/gamma/beta:(1,D) f32  ->  (Nq,D) f32
    1/sqrt(d_k) is already folded into the Q projection (wrapper).
    """
    def split_heads(t):
        # lane slices + leading-dim stack: no minor-dim reshape/transpose relayout
        return jnp.stack(
            [t[:, h * D_K:(h + 1) * D_K] for h in range(N_HEADS)], axis=0
        ).astype(jnp.bfloat16)

    qh, kh, vh = split_heads(q), split_heads(k), split_heads(v)     # (H, N, Dk)

    # ONE head-batched score contraction (bf16 in, f32 acc)
    s = jnp.einsum("hqd,hkd->hqk", qh, kh,
                   preferred_element_type=jnp.float32)              # (H, Nq, Nkv)
    s = s + bias[None, :, :]                                        # f32 mask bias
    m = jnp.max(s, axis=-1, keepdims=True)
    p = jnp.exp(s - m)
    denom = jnp.sum(p, axis=-1, keepdims=True)
    p = p * pl.reciprocal(denom, approx=True)                       # EUP divide

    # ONE head-batched context contraction
    ctx = jnp.einsum("hqk,hkd->hqd", p.astype(jnp.bfloat16), vh,
                     preferred_element_type=jnp.float32)            # (H, Nq, Dk)
    # reassemble heads on the lane axis -> ONE W_o matmul (contraction = D_MODEL)
    ctx = jnp.concatenate([ctx[h] for h in range(N_HEADS)], axis=-1)  # (Nq, D)
    o = jnp.dot(ctx.astype(jnp.bfloat16), w_o,
                preferred_element_type=jnp.float32) + b_o
    return _layernorm(x_res + o, gamma, beta)


# ------------------------- fused Pallas kernel (per batch element) -------------------------
def _make_kernel(Nq, Nk, w_offs, v_offs):
    def kernel(x_ref, y_ref, mx_ref, my_ref, pad_ref, w_ref, vec_ref, out_ref):
        def W(i):                               # bf16 weight segment (lane-aligned)
            o, n = w_offs[i]
            return w_ref[:, o:o + n]

        def V(i):                               # f32 bias / LayerNorm segment
            o, n = v_offs[i]
            return vec_ref[:, o:o + n]

        x = x_ref[...]                                           # (Nq, D) f32
        y = y_ref[...]                                           # (Nk, D) f32
        pad = jnp.broadcast_to(pad_ref[...], (Nq, D_MODEL))      # hoisted broadcast
        bias_x = mx_ref[...].astype(jnp.float32) * NEG_INF       # (Nq, Nq) f32
        bias_y = my_ref[...].astype(jnp.float32) * NEG_INF       # (Nq, Nk) f32

        # ---- self attention: fused QKV projection (one matmul) ----
        qkv = jnp.dot(x.astype(jnp.bfloat16), W(0),
                      preferred_element_type=jnp.float32) + V(0)
        q = qkv[:, :D_MODEL]
        k = qkv[:, D_MODEL:2 * D_MODEL]
        v = qkv[:, 2 * D_MODEL:]
        out1 = _attend(q, k, v, bias_x, x, W(1), V(1), V(2), V(3)) * pad

        # ---- cross attention: Q from out1, fused K/V projection of y ----
        q2 = jnp.dot(out1.astype(jnp.bfloat16), W(2),
                     preferred_element_type=jnp.float32) + V(4)
        kv2 = jnp.dot(y.astype(jnp.bfloat16), W(3),
                      preferred_element_type=jnp.float32) + V(5)
        k2 = kv2[:, :D_MODEL]
        v2 = kv2[:, D_MODEL:]
        out2 = _attend(q2, k2, v2, bias_y, out1, W(4), V(6), V(7), V(8)) * pad

        # ---- position-wise FFN ----
        h1 = jnp.maximum(
            jnp.dot(out2.astype(jnp.bfloat16), W(5),
                    preferred_element_type=jnp.float32) + V(9), 0.0)
        # W(6) stores ff_w2^T (D, D_FF): contract both operands on the D_FF axis.
        o3 = lax.dot_general(h1.astype(jnp.bfloat16), W(6),
                             (((1,), (1,)), ((), ())),
                             preferred_element_type=jnp.float32) + V(10)
        out3 = _layernorm(out2 + o3, V(11), V(12)) * pad

        out_ref[...] = out3.astype(out_ref.dtype)

    return kernel


# ------------------------- slab packing -------------------------
def _pack_lane_slab(arrays, dtype):
    """Concat 2-D arrays along the lane axis, each segment padded to 128 lanes.

    Returns (slab, offsets) with offsets[i] = (lane_offset, logical_width)."""
    rows = arrays[0].shape[0]
    segs, offs, off = [], [], 0
    for a in arrays:
        n = a.shape[1]
        width = ((n + LANE - 1) // LANE) * LANE
        seg = jnp.zeros((rows, width), dtype).at[:, :n].set(a.astype(dtype))
        segs.append(seg)
        offs.append((off, n))
        off += width
    return jnp.concatenate(segs, axis=1), offs


# ------------------------- wrapper -------------------------
def concat_attention_layer(x, y, mask_pad, mask_x, mask_y, params):
    """Pallas equivalent of ConcatAttentionLayer.forward (inference, dropout = identity)."""
    B, Nq, D = x.shape
    Nk = y.shape[1]
    scale = 1.0 / math.sqrt(D_K)

    wq, bq, wk, bk, wv, bv, wo, bo, g, be = params["self_att"]
    sa_wqkv = jnp.concatenate([wq * scale, wk, wv], axis=1)     # (D, 3D), scale folded
    sa_bqkv = jnp.concatenate([bq * scale, bk, bv], axis=1)     # (1, 3D)

    wq2, bq2, wk2, bk2, wv2, bv2, wo2, bo2, g2, be2 = params["vis_att"]
    va_wkv = jnp.concatenate([wk2, wv2], axis=1)                # (D, 2D)
    va_bkv = jnp.concatenate([bk2, bv2], axis=1)                # (1, 2D)

    w1, b1, w2, b2, g3, be3 = params["pwff"]

    # ---- pack all parameters into 2 lane-padded slabs (2 DMAs instead of ~23) ----
    w_slab, w_offs = _pack_lane_slab(
        [sa_wqkv, wo, wq2 * scale, va_wkv, wo2, w1, w2.T], jnp.bfloat16)
    v_slab, v_offs = _pack_lane_slab(
        [sa_bqkv, bo, g, be, bq2 * scale, va_bkv, bo2, g2, be2, b1, b2, g3, be3],
        jnp.float32)

    # compact (bf16) masks; converted to an f32 additive bias in-kernel
    mx = mask_x.astype(jnp.bfloat16)
    my = mask_y.astype(jnp.bfloat16)
    pad = mask_pad.astype(jnp.float32)

    kernel = _make_kernel(Nq, Nk, w_offs, v_offs)
    wl, vl = w_slab.shape[1], v_slab.shape[1]

    out = pl.pallas_call(
        kernel,
        out_shape=jax.ShapeDtypeStruct((B, Nq, D), x.dtype),
        grid=(B,),
        in_specs=[
            pl.BlockSpec((None, Nq, D), lambda b: (b, 0, 0)),    # x
            pl.BlockSpec((None, Nk, D), lambda b: (b, 0, 0)),    # y
            pl.BlockSpec((None, Nq, Nq), lambda b: (b, 0, 0)),   # mask_x (bf16)
            pl.BlockSpec((None, Nq, Nk), lambda b: (b, 0, 0)),   # mask_y (bf16)
            pl.BlockSpec((None, Nq, 1), lambda b: (b, 0, 0)),    # mask_pad
            pl.BlockSpec((D, wl), lambda b: (0, 0)),             # weight slab (resident)
            pl.BlockSpec((1, vl), lambda b: (0, 0)),             # bias/LN slab (resident)
        ],
        out_specs=pl.BlockSpec((None, Nq, D), lambda b: (b, 0, 0)),
        compiler_params=pltpu.CompilerParams(
            dimension_semantics=("parallel",),
            vmem_limit_bytes=32 * 1024 * 1024),
    )(x, y, mx, my, pad, w_slab, v_slab)
    return out


# ------------------------- pure-JAX reference (for validation) -------------------------
def ref_mha(x, kv, mask, pad, params):
    wq, bq, wk, bk, wv, bv, wo, bo, g, be = params
    B, Nq, D = x.shape
    Nk = kv.shape[1]
    q = (x @ wq + bq).reshape(B, Nq, N_HEADS, D_K).transpose(0, 2, 1, 3)
    k = (kv @ wk + bk).reshape(B, Nk, N_HEADS, D_K).transpose(0, 2, 1, 3)
    v = (kv @ wv + bv).reshape(B, Nk, N_HEADS, D_K).transpose(0, 2, 1, 3)
    att = jnp.einsum("bhqd,bhkd->bhqk", q, k) / math.sqrt(D_K)
    att = jnp.where(mask[:, None] > 0.5, NEG_INF, att)
    att = jax.nn.softmax(att, axis=-1)
    o = jnp.einsum("bhqk,bhkd->bhqd", att, v).transpose(0, 2, 1, 3).reshape(B, Nq, D)
    o = o @ wo + bo
    return _layernorm(x + o, g, be) * pad


def ref_pwff(x, pad, params):
    w1, b1, w2, b2, g, be = params
    o = jnp.maximum(x @ w1 + b1, 0.0) @ w2 + b2
    return _layernorm(x + o, g, be) * pad


def ref_forward(x, y, mask_pad, mask_x, mask_y, params):
    out = ref_mha(x, x, mask_x, mask_pad, params["self_att"])
    out = ref_mha(out, y, mask_y, mask_pad, params["vis_att"])
    return ref_pwff(out, mask_pad, params["pwff"])


# ------------------------- parameter init -------------------------
def init_mha_params(key):
    ks = jax.random.split(key, 8)
    s = 0.1
    wq = s * jax.random.normal(ks[0], (D_MODEL, D_MODEL), jnp.float32)
    bq = s * jax.random.normal(ks[1], (1, D_MODEL), jnp.float32)
    wk = s * jax.random.normal(ks[2], (D_MODEL, D_MODEL), jnp.float32)
    bk = s * jax.random.normal(ks[3], (1, D_MODEL), jnp.float32)
    wv = s * jax.random.normal(ks[4], (D_MODEL, D_MODEL), jnp.float32)
    bv = s * jax.random.normal(ks[5], (1, D_MODEL), jnp.float32)
    wo = s * jax.random.normal(ks[6], (D_MODEL, D_MODEL), jnp.float32)
    bo = s * jax.random.normal(ks[7], (1, D_MODEL), jnp.float32)
    g = jnp.ones((1, D_MODEL), jnp.float32)
    be = jnp.zeros((1, D_MODEL), jnp.float32)
    return (wq, bq, wk, bk, wv, bv, wo, bo, g, be)


def init_pwff_params(key):
    ks = jax.random.split(key, 4)
    s = 0.1
    w1 = s * jax.random.normal(ks[0], (D_MODEL, D_FF), jnp.float32)
    b1 = s * jax.random.normal(ks[1], (1, D_FF), jnp.float32)
    w2 = s * jax.random.normal(ks[2], (D_FF, D_MODEL), jnp.float32)
    b2 = s * jax.random.normal(ks[3], (1, D_MODEL), jnp.float32)
    g = jnp.ones((1, D_MODEL), jnp.float32)
    be = jnp.zeros((1, D_MODEL), jnp.float32)
    return (w1, b1, w2, b2, g, be)


if __name__ == "__main__":
    key = jax.random.PRNGKey(0)
    k_x, k_y, k_p1, k_p2, k_p3 = jax.random.split(key, 5)

    B, NQ, NK = 2, 8, 16   # batch, decoder seq len, #visual regions
    x = jax.random.normal(k_x, (B, NQ, D_MODEL), jnp.float32)
    y = jax.random.normal(k_y, (B, NK, D_MODEL), jnp.float32)

    # self-attention mask: causal (1.0 == masked), broadcast over batch
    mask_x = jnp.broadcast_to(
        jnp.triu(jnp.ones((NQ, NQ), jnp.float32), k=1)[None], (B, NQ, NQ))
    # cross-attention mask: last 3 visual regions of batch 1 are padding
    mask_y = jnp.zeros((B, NQ, NK), jnp.float32).at[1, :, NK - 3:].set(1.0)
    # word padding mask (multiplicative): last 2 positions of batch 1 are padding
    mask_pad = jnp.ones((B, NQ, 1), jnp.float32).at[1, NQ - 2:, :].set(0.0)

    params = {
        "self_att": init_mha_params(k_p1),
        "vis_att": init_mha_params(k_p2),
        "pwff": init_pwff_params(k_p3),
    }

    out = jax.block_until_ready(
        concat_attention_layer(x, y, mask_pad, mask_x, mask_y, params))
    ref = jax.block_until_ready(ref_forward(x, y, mask_pad, mask_x, mask_y, params))

    # bf16 matmul operands (f32 accumulation) across three stacked sub-layers:
    # compare against the f32 reference at a bf16-appropriate tolerance.
    np.testing.assert_allclose(np.asarray(out), np.asarray(ref), rtol=2e-2, atol=2e-2)
    assert out.shape == (B, NQ, D_MODEL)

    print("KERNEL_OK")
</pallas_src>

<mosaic_0001>
module attributes {stable_mosaic.version = 11 : i64} {
  func.func @kernel(%arg0: i32, %arg1: memref<1x8x32xf32, #tpu.memory_space<vmem>>, %arg2: memref<1x16x32xf32, #tpu.memory_space<vmem>>, %arg3: memref<1x8x8xbf16, #tpu.memory_space<vmem>>, %arg4: memref<1x8x16xbf16, #tpu.memory_space<vmem>>, %arg5: memref<1x8x1xf32, #tpu.memory_space<vmem>>, %arg6: memref<32x896xbf16, #tpu.memory_space<vmem>>, %arg7: memref<1x1664xf32, #tpu.memory_space<vmem>>, %arg8: memref<1x8x32xf32, #tpu.memory_space<vmem>>) attributes {dimension_semantics = [#tpu.dimension_semantics<parallel>], iteration_bounds = array<i64: 2>, scalar_prefetch = 0 : i64, scratch_operands = 0 : i64, tpu.core_type = #tpu.core_type<tc>, window_params = [{transform_indices = @transform_0, window_bounds = array<i64: 1, 8, 32>}, {transform_indices = @transform_1, window_bounds = array<i64: 1, 16, 32>}, {transform_indices = @transform_2, window_bounds = array<i64: 1, 8, 8>}, {transform_indices = @transform_3, window_bounds = array<i64: 1, 8, 16>}, {transform_indices = @transform_4, window_bounds = array<i64: 1, 8, 1>}, {pipeline_mode = #tpu.pipeline_mode<synchronous>, transform_indices = @transform_5, window_bounds = array<i64: 32, 896>}, {pipeline_mode = #tpu.pipeline_mode<synchronous>, transform_indices = @transform_6, window_bounds = array<i64: 1, 1664>}, {transform_indices = @transform_7, window_bounds = array<i64: 1, 8, 32>}]} {
    %c0 = arith.constant 0 : index
    %c0_0 = arith.constant 0 : index
    %c0_1 = arith.constant 0 : index
    %0 = vector.load %arg1[%c0, %c0_0, %c0_1] : memref<1x8x32xf32, #tpu.memory_space<vmem>>, vector<1x8x32xf32>
    %1 = vector.shape_cast %0 : vector<1x8x32xf32> to vector<8x32xf32>
    %c0_2 = arith.constant 0 : index
    %c0_3 = arith.constant 0 : index
    %c0_4 = arith.constant 0 : index
    %2 = vector.load %arg2[%c0_2, %c0_3, %c0_4] : memref<1x16x32xf32, #tpu.memory_space<vmem>>, vector<1x16x32xf32>
    %3 = vector.shape_cast %2 : vector<1x16x32xf32> to vector<16x32xf32>
    %c0_5 = arith.constant 0 : index
    %c0_6 = arith.constant 0 : index
    %c0_7 = arith.constant 0 : index
    %4 = vector.load %arg5[%c0_5, %c0_6, %c0_7] : memref<1x8x1xf32, #tpu.memory_space<vmem>>, vector<1x8x1xf32>
    %5 = vector.shape_cast %4 : vector<1x8x1xf32> to vector<8x1xf32>
    %6 = vector.shape_cast %5 : vector<8x1xf32> to vector<8x1xf32>
    %7 = vector.broadcast %6 : vector<8x1xf32> to vector<8x32xf32>
    %c0_8 = arith.constant 0 : index
    %c0_9 = arith.constant 0 : index
    %c0_10 = arith.constant 0 : index
    %8 = vector.load %arg3[%c0_8, %c0_9, %c0_10] : memref<1x8x8xbf16, #tpu.memory_space<vmem>>, vector<1x8x8xbf16>
    %9 = vector.shape_cast %8 : vector<1x8x8xbf16> to vector<8x8xbf16>
    %10 = arith.extf %9 : vector<8x8xbf16> to vector<8x8xf32>
    %cst = arith.constant -1.000000e+09 : f32
    %11 = vector.broadcast %cst : f32 to vector<8x8xf32>
    %12 = arith.mulf %10, %11 : vector<8x8xf32>
    %c0_11 = arith.constant 0 : index
    %c0_12 = arith.constant 0 : index
    %c0_13 = arith.constant 0 : index
    %13 = vector.load %arg4[%c0_11, %c0_12, %c0_13] : memref<1x8x16xbf16, #tpu.memory_space<vmem>>, vector<1x8x16xbf16>
    %14 = vector.shape_cast %13 : vector<1x8x16xbf16> to vector<8x16xbf16>
    %15 = arith.extf %14 : vector<8x16xbf16> to vector<8x16xf32>
    %cst_14 = arith.constant -1.000000e+09 : f32
    %16 = vector.broadcast %cst_14 : f32 to vector<8x16xf32>
    %17 = arith.mulf %15, %16 : vector<8x16xf32>
    %18 = arith.truncf %1 : vector<8x32xf32> to vector<8x32xbf16>
    %c0_15 = arith.constant 0 : index
    %c0_16 = arith.constant 0 : index
    %19 = vector.load %arg6[%c0_15, %c0_16] : memref<32x896xbf16, #tpu.memory_space<vmem>>, vector<32x96xbf16>
    %cst_17 = arith.constant dense<0.000000e+00> : vector<8x96xf32>
    %20 = tpu.matmul %18, %19, %cst_17 {dimension_numbers = #tpu.dot_dimension_numbers<[1], [0], [0], [1], [0, 0, 1, 1], [], []>} : vector<8x32xbf16>, vector<32x96xbf16>, vector<8x96xf32> -> vector<8x96xf32>
    %c0_18 = arith.constant 0 : index
    %c0_19 = arith.constant 0 : index
    %21 = vector.load %arg7[%c0_18, %c0_19] : memref<1x1664xf32, #tpu.memory_space<vmem>>, vector<1x96xf32>
    %22 = vector.broadcast %21 : vector<1x96xf32> to vector<8x96xf32>
    %23 = arith.addf %20, %22 : vector<8x96xf32>
    %24 = vector.extract_strided_slice %23 {offsets = [0, 0], sizes = [8, 32], strides = [1, 1]} : vector<8x96xf32> to vector<8x32xf32>
    %25 = vector.extract_strided_slice %23 {offsets = [0, 32], sizes = [8, 32], strides = [1, 1]} : vector<8x96xf32> to vector<8x32xf32>
    %26 = vector.extract_strided_slice %23 {offsets = [0, 64], sizes = [8, 32], strides = [1, 1]} : vector<8x96xf32> to vector<8x32xf32>
    %c0_20 = arith.constant 0 : index
    %c128 = arith.constant 128 : index
    %27 = vector.load %arg6[%c0_20, %c128] : memref<32x896xbf16, #tpu.memory_space<vmem>>, vector<32x32xbf16>
    %c0_21 = arith.constant 0 : index
    %c128_22 = arith.constant 128 : index
    %28 = vector.load %arg7[%c0_21, %c128_22] : memref<1x1664xf32, #tpu.memory_space<vmem>>, vector<1x32xf32>
    %c0_23 = arith.constant 0 : index
    %c256 = arith.constant 256 : index
    %29 = vector.load %arg7[%c0_23, %c256] : memref<1x1664xf32, #tpu.memory_space<vmem>>, vector<1x32xf32>
    %c0_24 = arith.constant 0 : index
    %c384 = arith.constant 384 : index
    %30 = vector.load %arg7[%c0_24, %c384] : memref<1x1664xf32, #tpu.memory_space<vmem>>, vector<1x32xf32>
    %31 = vector.extract_strided_slice %24 {offsets = [0, 0], sizes = [8, 8], strides = [1, 1]} : vector<8x32xf32> to vector<8x8xf32>
    %32 = vector.extract_strided_slice %24 {offsets = [0, 8], sizes = [8, 8], strides = [1, 1]} : vector<8x32xf32> to vector<8x8xf32>
    %33 = vector.extract_strided_slice %24 {offsets = [0, 16], sizes = [8, 8], strides = [1, 1]} : vector<8x32xf32> to vector<8x8xf32>
    %34 = vector.extract_strided_slice %24 {offsets = [0, 24], sizes = [8, 8], strides = [1, 1]} : vector<8x32xf32> to vector<8x8xf32>
    %35 = vector.shape_cast %31 : vector<8x8xf32> to vector<1x8x8xf32>
    %36 = vector.shape_cast %32 : vector<8x8xf32> to vector<1x8x8xf32>
    %37 = vector.shape_cast %33 : vector<8x8xf32> to vector<1x8x8xf32>
    %38 = vector.shape_cast %34 : vector<8x8xf32> to vector<1x8x8xf32>
    %39 = tpu.concatenate %35, %36, %37, %38 in 0 : vector<1x8x8xf32>, vector<1x8x8xf32>, vector<1x8x8xf32>, vector<1x8x8xf32> -> vector<4x8x8xf32>
    %40 = arith.truncf %39 : vector<4x8x8xf32> to vector<4x8x8xbf16>
    %41 = vector.extract_strided_slice %25 {offsets = [0, 0], sizes = [8, 8], strides = [1, 1]} : vector<8x32xf32> to vector<8x8xf32>
    %42 = vector.extract_strided_slice %25 {offsets = [0, 8], sizes = [8, 8], strides = [1, 1]} : vector<8x32xf32> to vector<8x8xf32>
    %43 = vector.extract_strided_slice %25 {offsets = [0, 16], sizes = [8, 8], strides = [1, 1]} : vector<8x32xf32> to vector<8x8xf32>
    %44 = vector.extract_strided_slice %25 {offsets = [0, 24], sizes = [8, 8], strides = [1, 1]} : vector<8x32xf32> to vector<8x8xf32>
    %45 = vector.shape_cast %41 : vector<8x8xf32> to vector<1x8x8xf32>
    %46 = vector.shape_cast %42 : vector<8x8xf32> to vector<1x8x8xf32>
    %47 = vector.shape_cast %43 : vector<8x8xf32> to vector<1x8x8xf32>
    %48 = vector.shape_cast %44 : vector<8x8xf32> to vector<1x8x8xf32>
    %49 = tpu.concatenate %45, %46, %47, %48 in 0 : vector<1x8x8xf32>, vector<1x8x8xf32>, vector<1x8x8xf32>, vector<1x8x8xf32> -> vector<4x8x8xf32>
    %50 = arith.truncf %49 : vector<4x8x8xf32> to vector<4x8x8xbf16>
    %51 = vector.extract_strided_slice %26 {offsets = [0, 0], sizes = [8, 8], strides = [1, 1]} : vector<8x32xf32> to vector<8x8xf32>
    %52 = vector.extract_strided_slice %26 {offsets = [0, 8], sizes = [8, 8], strides = [1, 1]} : vector<8x32xf32> to vector<8x8xf32>
    %53 = vector.extract_strided_slice %26 {offsets = [0, 16], sizes = [8, 8], strides = [1, 1]} : vector<8x32xf32> to vector<8x8xf32>
    %54 = vector.extract_strided_slice %26 {offsets = [0, 24], sizes = [8, 8], strides = [1, 1]} : vector<8x32xf32> to vector<8x8xf32>
    %55 = vector.shape_cast %51 : vector<8x8xf32> to vector<1x8x8xf32>
    %56 = vector.shape_cast %52 : vector<8x8xf32> to vector<1x8x8xf32>
    %57 = vector.shape_cast %53 : vector<8x8xf32> to vector<1x8x8xf32>
    %58 = vector.shape_cast %54 : vector<8x8xf32> to vector<1x8x8xf32>
    %59 = tpu.concatenate %55, %56, %57, %58 in 0 : vector<1x8x8xf32>, vector<1x8x8xf32>, vector<1x8x8xf32>, vector<1x8x8xf32> -> vector<4x8x8xf32>
    %60 = arith.truncf %59 : vector<4x8x8xf32> to vector<4x8x8xbf16>
    "tpu.trace_start"() <{level = 10 : i32, message = "hqd,hkd->hqk"}> : () -> ()
    %cst_25 = arith.constant dense<0.000000e+00> : vector<4x8x8xf32>
    %61 = tpu.matmul %40, %50, %cst_25 {dimension_numbers = #tpu.dot_dimension_numbers<[2], [2], [1], [1], [0, 0, 0, 1, 1, 1], [0], [0]>} : vector<4x8x8xbf16>, vector<4x8x8xbf16>, vector<4x8x8xf32> -> vector<4x8x8xf32>
    "tpu.trace_stop"() : () -> ()
    %62 = vector.shape_cast %12 : vector<8x8xf32> to vector<1x8x8xf32>
    %63 = vector.broadcast %62 : vector<1x8x8xf32> to vector<4x8x8xf32>
    %64 = arith.addf %61, %63 : vector<4x8x8xf32>
    %cst_26 = arith.constant dense<0xFF800000> : vector<4x8xf32>
    %65 = vector.multi_reduction <maximumf>, %64, %cst_26 [2] : vector<4x8x8xf32> to vector<4x8xf32>
    %66 = vector.shape_cast %65 : vector<4x8xf32> to vector<4x8x1xf32>
    %67 = vector.broadcast %66 : vector<4x8x1xf32> to vector<4x8x8xf32>
    %68 = arith.subf %64, %67 : vector<4x8x8xf32>
    %69 = math.exp %68 : vector<4x8x8xf32>
    %cst_27 = arith.constant dense<0.000000e+00> : vector<4x8xf32>
    %70 = vector.multi_reduction <add>, %69, %cst_27 [2] : vector<4x8x8xf32> to vector<4x8xf32>
    %71 = vector.shape_cast %70 : vector<4x8xf32> to vector<4x8x1xf32>
    %72 = tpu.reciprocal %71 {approx = true} : vector<4x8x1xf32> -> vector<4x8x1xf32>
    %73 = vector.broadcast %72 : vector<4x8x1xf32> to vector<4x8x8xf32>
    %74 = arith.mulf %69, %73 : vector<4x8x8xf32>
    %75 = arith.truncf %74 : vector<4x8x8xf32> to vector<4x8x8xbf16>
    "tpu.trace_start"() <{level = 10 : i32, message = "hqk,hkd->hqd"}> : () -> ()
    %cst_28 = arith.constant dense<0.000000e+00> : vector<4x8x8xf32>
    %76 = tpu.matmul %75, %60, %cst_28 {dimension_numbers = #tpu.dot_dimension_numbers<[2], [1], [1], [2], [0, 0, 0, 1, 1, 2], [0], [0]>} : vector<4x8x8xbf16>, vector<4x8x8xbf16>, vector<4x8x8xf32> -> vector<4x8x8xf32>
    "tpu.trace_stop"() : () -> ()
    %77 = vector.extract_strided_slice %76 {offsets = [0, 0, 0], sizes = [1, 8, 8], strides = [1, 1, 1]} : vector<4x8x8xf32> to vector<1x8x8xf32>
    %78 = vector.shape_cast %77 : vector<1x8x8xf32> to vector<8x8xf32>
    %79 = vector.extract_strided_slice %76 {offsets = [1, 0, 0], sizes = [1, 8, 8], strides = [1, 1, 1]} : vector<4x8x8xf32> to vector<1x8x8xf32>
    %80 = vector.shape_cast %79 : vector<1x8x8xf32> to vector<8x8xf32>
    %81 = vector.extract_strided_slice %76 {offsets = [2, 0, 0], sizes = [1, 8, 8], strides = [1, 1, 1]} : vector<4x8x8xf32> to vector<1x8x8xf32>
    %82 = vector.shape_cast %81 : vector<1x8x8xf32> to vector<8x8xf32>
    %83 = vector.extract_strided_slice %76 {offsets = [3, 0, 0], sizes = [1, 8, 8], strides = [1, 1, 1]} : vector<4x8x8xf32> to vector<1x8x8xf32>
    %84 = vector.shape_cast %83 : vector<1x8x8xf32> to vector<8x8xf32>
    %85 = tpu.concatenate %78, %80, %82, %84 in 1 : vector<8x8xf32>, vector<8x8xf32>, vector<8x8xf32>, vector<8x8xf32> -> vector<8x32xf32>
    %86 = arith.truncf %85 : vector<8x32xf32> to vector<8x32xbf16>
    %cst_29 = arith.constant dense<0.000000e+00> : vector<8x32xf32>
    %87 = tpu.matmul %86, %27, %cst_29 {dimension_numbers = #tpu.dot_dimension_numbers<[1], [0], [0], [1], [0, 0, 1, 1], [], []>} : vector<8x32xbf16>, vector<32x32xbf16>, vector<8x32xf32> -> vector<8x32xf32>
    %88 = vector.broadcast %28 : vector<1x32xf32> to vector<8x32xf32>
    %89 = arith.addf %87, %88 : vector<8x32xf32>
    %90 = arith.addf %1, %89 : vector<8x32xf32>
    %cst_30 = arith.constant dense<0.000000e+00> : vector<8xf32>
    %91 = vector.multi_reduction <add>, %90, %cst_30 [1] : vector<8x32xf32> to vector<8xf32>
    %92 = vector.shape_cast %91 : vector<8xf32> to vector<8x1xf32>
    %cst_31 = arith.constant 3.200000e+01 : f32
    %93 = vector.broadcast %cst_31 : f32 to vector<8x1xf32>
    %94 = arith.divf %92, %93 : vector<8x1xf32>
    %95 = vector.broadcast %94 : vector<8x1xf32> to vector<8x32xf32>
    %96 = arith.subf %90, %95 : vector<8x32xf32>
    %97 = arith.mulf %96, %96 : vector<8x32xf32>
    %cst_32 = arith.constant dense<0.000000e+00> : vector<8xf32>
    %98 = vector.multi_reduction <add>, %97, %cst_32 [1] : vector<8x32xf32> to vector<8xf32>
    %99 = vector.shape_cast %98 : vector<8xf32> to vector<8x1xf32>
    %cst_33 = arith.constant 3.200000e+01 : f32
    %100 = vector.broadcast %cst_33 : f32 to vector<8x1xf32>
    %101 = arith.divf %99, %100 : vector<8x1xf32>
    %102 = vector.broadcast %94 : vector<8x1xf32> to vector<8x32xf32>
    %103 = arith.subf %90, %102 : vector<8x32xf32>
    %cst_34 = arith.constant 9.99999974E-6 : f32
    %104 = vector.broadcast %cst_34 : f32 to vector<8x1xf32>
    %105 = arith.addf %101, %104 : vector<8x1xf32>
    %106 = math.rsqrt %105 : vector<8x1xf32>
    %107 = vector.broadcast %106 : vector<8x1xf32> to vector<8x32xf32>
    %108 = arith.mulf %103, %107 : vector<8x32xf32>
    %109 = vector.broadcast %29 : vector<1x32xf32> to vector<8x32xf32>
    %110 = arith.mulf %108, %109 : vector<8x32xf32>
    %111 = vector.broadcast %30 : vector<1x32xf32> to vector<8x32xf32>
    %112 = arith.addf %110, %111 : vector<8x32xf32>
    %113 = arith.mulf %112, %7 : vector<8x32xf32>
    %114 = arith.truncf %113 : vector<8x32xf32> to vector<8x32xbf16>
    %c0_35 = arith.constant 0 : index
    %c256_36 = arith.constant 256 : index
    %115 = vector.load %arg6[%c0_35, %c256_36] : memref<32x896xbf16, #tpu.memory_space<vmem>>, vector<32x32xbf16>
    %cst_37 = arith.constant dense<0.000000e+00> : vector<8x32xf32>
    %116 = tpu.matmul %114, %115, %cst_37 {dimension_numbers = #tpu.dot_dimension_numbers<[1], [0], [0], [1], [0, 0, 1, 1], [], []>} : vector<8x32xbf16>, vector<32x32xbf16>, vector<8x32xf32> -> vector<8x32xf32>
    %c0_38 = arith.constant 0 : index
    %c512 = arith.constant 512 : index
    %117 = vector.load %arg7[%c0_38, %c512] : memref<1x1664xf32, #tpu.memory_space<vmem>>, vector<1x32xf32>
    %118 = vector.broadcast %117 : vector<1x32xf32> to vector<8x32xf32>
    %119 = arith.addf %116, %118 : vector<8x32xf32>
    %120 = arith.truncf %3 : vector<16x32xf32> to vector<16x32xbf16>
    %c0_39 = arith.constant 0 : index
    %c384_40 = arith.constant 384 : index
    %121 = vector.load %arg6[%c0_39, %c384_40] : memref<32x896xbf16, #tpu.memory_space<vmem>>, vector<32x64xbf16>
    %cst_41 = arith.constant dense<0.000000e+00> : vector<16x64xf32>
    %122 = tpu.matmul %120, %121, %cst_41 {dimension_numbers = #tpu.dot_dimension_numbers<[1], [0], [0], [1], [0, 0, 1, 1], [], []>} : vector<16x32xbf16>, vector<32x64xbf16>, vector<16x64xf32> -> vector<16x64xf32>
    %c0_42 = arith.constant 0 : index
    %c640 = arith.constant 640 : index
    %123 = vector.load %arg7[%c0_42, %c640] : memref<1x1664xf32, #tpu.memory_space<vmem>>, vector<1x64xf32>
    %124 = vector.broadcast %123 : vector<1x64xf32> to vector<16x64xf32>
    %125 = arith.addf %122, %124 : vector<16x64xf32>
    %126 = vector.extract_strided_slice %125 {offsets = [0, 0], sizes = [16, 32], strides = [1, 1]} : vector<16x64xf32> to vector<16x32xf32>
    %127 = vector.extract_strided_slice %125 {offsets = [0, 32], sizes = [16, 32], strides = [1, 1]} : vector<16x64xf32> to vector<16x32xf32>
    %c0_43 = arith.constant 0 : index
    %c512_44 = arith.constant 512 : index
    %128 = vector.load %arg6[%c0_43, %c512_44] : memref<32x896xbf16, #tpu.memory_space<vmem>>, vector<32x32xbf16>
    %c0_45 = arith.constant 0 : index
    %c768 = arith.constant 768 : index
    %129 = vector.load %arg7[%c0_45, %c768] : memref<1x1664xf32, #tpu.memory_space<vmem>>, vector<1x32xf32>
    %c0_46 = arith.constant 0 : index
    %c896 = arith.constant 896 : index
    %130 = vector.load %arg7[%c0_46, %c896] : memref<1x1664xf32, #tpu.memory_space<vmem>>, vector<1x32xf32>
    %c0_47 = arith.constant 0 : index
    %c1024 = arith.constant 1024 : index
    %131 = vector.load %arg7[%c0_47, %c1024] : memref<1x1664xf32, #tpu.memory_space<vmem>>, vector<1x32xf32>
    %132 = vector.extract_strided_slice %119 {offsets = [0, 0], sizes = [8, 8], strides = [1, 1]} : vector<8x32xf32> to vector<8x8xf32>
    %133 = vector.extract_strided_slice %119 {offsets = [0, 8], sizes = [8, 8], strides = [1, 1]} : vector<8x32xf32> to vector<8x8xf32>
    %134 = vector.extract_strided_slice %119 {offsets = [0, 16], sizes = [8, 8], strides = [1, 1]} : vector<8x32xf32> to vector<8x8xf32>
    %135 = vector.extract_strided_slice %119 {offsets = [0, 24], sizes = [8, 8], strides = [1, 1]} : vector<8x32xf32> to vector<8x8xf32>
    %136 = vector.shape_cast %132 : vector<8x8xf32> to vector<1x8x8xf32>
    %137 = vector.shape_cast %133 : vector<8x8xf32> to vector<1x8x8xf32>
    %138 = vector.shape_cast %134 : vector<8x8xf32> to vector<1x8x8xf32>
    %139 = vector.shape_cast %135 : vector<8x8xf32> to vector<1x8x8xf32>
    %140 = tpu.concatenate %136, %137, %138, %139 in 0 : vector<1x8x8xf32>, vector<1x8x8xf32>, vector<1x8x8xf32>, vector<1x8x8xf32> -> vector<4x8x8xf32>
    %141 = arith.truncf %140 : vector<4x8x8xf32> to vector<4x8x8xbf16>
    %142 = vector.extract_strided_slice %126 {offsets = [0, 0], sizes = [16, 8], strides = [1, 1]} : vector<16x32xf32> to vector<16x8xf32>
    %143 = vector.extract_strided_slice %126 {offsets = [0, 8], sizes = [16, 8], strides = [1, 1]} : vector<16x32xf32> to vector<16x8xf32>
    %144 = vector.extract_strided_slice %126 {offsets = [0, 16], sizes = [16, 8], strides = [1, 1]} : vector<16x32xf32> to vector<16x8xf32>
    %145 = vector.extract_strided_slice %126 {offsets = [0, 24], sizes = [16, 8], strides = [1, 1]} : vector<16x32xf32> to vector<16x8xf32>
    %146 = vector.shape_cast %142 : vector<16x8xf32> to vector<1x16x8xf32>
    %147 = vector.shape_cast %143 : vector<16x8xf32> to vector<1x16x8xf32>
    %148 = vector.shape_cast %144 : vector<16x8xf32> to vector<1x16x8xf32>
    %149 = vector.shape_cast %145 : vector<16x8xf32> to vector<1x16x8xf32>
    %150 = tpu.concatenate %146, %147, %148, %149 in 0 : vector<1x16x8xf32>, vector<1x16x8xf32>, vector<1x16x8xf32>, vector<1x16x8xf32> -> vector<4x16x8xf32>
    %151 = arith.truncf %150 : vector<4x16x8xf32> to vector<4x16x8xbf16>
    %152 = vector.extract_strided_slice %127 {offsets = [0, 0], sizes = [16, 8], strides = [1, 1]} : vector<16x32xf32> to vector<16x8xf32>
    %153 = vector.extract_strided_slice %127 {offsets = [0, 8], sizes = [16, 8], strides = [1, 1]} : vector<16x32xf32> to vector<16x8xf32>
    %154 = vector.extract_strided_slice %127 {offsets = [0, 16], sizes = [16, 8], strides = [1, 1]} : vector<16x32xf32> to vector<16x8xf32>
    %155 = vector.extract_strided_slice %127 {offsets = [0, 24], sizes = [16, 8], strides = [1, 1]} : vector<16x32xf32> to vector<16x8xf32>
    %156 = vector.shape_cast %152 : vector<16x8xf32> to vector<1x16x8xf32>
    %157 = vector.shape_cast %153 : vector<16x8xf32> to vector<1x16x8xf32>
    %158 = vector.shape_cast %154 : vector<16x8xf32> to vector<1x16x8xf32>
    %159 = vector.shape_cast %155 : vector<16x8xf32> to vector<1x16x8xf32>
    %160 = tpu.concatenate %156, %157, %158, %159 in 0 : vector<1x16x8xf32>, vector<1x16x8xf32>, vector<1x16x8xf32>, vector<1x16x8xf32> -> vector<4x16x8xf32>
    %161 = arith.truncf %160 : vector<4x16x8xf32> to vector<4x16x8xbf16>
    "tpu.trace_start"() <{level = 10 : i32, message = "hqd,hkd->hqk"}> : () -> ()
    %cst_48 = arith.constant dense<0.000000e+00> : vector<4x8x16xf32>
    %162 = tpu.matmul %141, %151, %cst_48 {dimension_numbers = #tpu.dot_dimension_numbers<[2], [2], [1], [1], [0, 0, 0, 1, 1, 1], [0], [0]>} : vector<4x8x8xbf16>, vector<4x16x8xbf16>, vector<4x8x16xf32> -> vector<4x8x16xf32>
    "tpu.trace_stop"() : () -> ()
    %163 = vector.shape_cast %17 : vector<8x16xf32> to vector<1x8x16xf32>
    %164 = vector.broadcast %163 : vector<1x8x16xf32> to vector<4x8x16xf32>
    %165 = arith.addf %162, %164 : vector<4x8x16xf32>
    %cst_49 = arith.constant dense<0xFF800000> : vector<4x8xf32>
    %166 = vector.multi_reduction <maximumf>, %165, %cst_49 [2] : vector<4x8x16xf32> to vector<4x8xf32>
    %167 = vector.shape_cast %166 : vector<4x8xf32> to vector<4x8x1xf32>
    %168 = vector.broadcast %167 : vector<4x8x1xf32> to vector<4x8x16xf32>
    %169 = arith.subf %165, %168 : vector<4x8x16xf32>
    %170 = math.exp %169 : vector<4x8x16xf32>
    %cst_50 = arith.constant dense<0.000000e+00> : vector<4x8xf32>
    %171 = vector.multi_reduction <add>, %170, %cst_50 [2] : vector<4x8x16xf32> to vector<4x8xf32>
    %172 = vector.shape_cast %171 : vector<4x8xf32> to vector<4x8x1xf32>
    %173 = tpu.reciprocal %172 {approx = true} : vector<4x8x1xf32> -> vector<4x8x1xf32>
    %174 = vector.broadcast %173 : vector<4x8x1xf32> to vector<4x8x16xf32>
    %175 = arith.mulf %170, %174 : vector<4x8x16xf32>
    %176 = arith.truncf %175 : vector<4x8x16xf32> to vector<4x8x16xbf16>
    "tpu.trace_start"() <{level = 10 : i32, message = "hqk,hkd->hqd"}> : () -> ()
    %cst_51 = arith.constant dense<0.000000e+00> : vector<4x8x8xf32>
    %177 = tpu.matmul %176, %161, %cst_51 {dimension_numbers = #tpu.dot_dimension_numbers<[2], [1], [1], [2], [0, 0, 0, 1, 1, 2], [0], [0]>} : vector<4x8x16xbf16>, vector<4x16x8xbf16>, vector<4x8x8xf32> -> vector<4x8x8xf32>
    "tpu.trace_stop"() : () -> ()
    %178 = vector.extract_strided_slice %177 {offsets = [0, 0, 0], sizes = [1, 8, 8], strides = [1, 1, 1]} : vector<4x8x8xf32> to vector<1x8x8xf32>
    %179 = vector.shape_cast %178 : vector<1x8x8xf32> to vector<8x8xf32>
    %180 = vector.extract_strided_slice %177 {offsets = [1, 0, 0], sizes = [1, 8, 8], strides = [1, 1, 1]} : vector<4x8x8xf32> to vector<1x8x8xf32>
    %181 = vector.shape_cast %180 : vector<1x8x8xf32> to vector<8x8xf32>
    %182 = vector.extract_strided_slice %177 {offsets = [2, 0, 0], sizes = [1, 8, 8], strides = [1, 1, 1]} : vector<4x8x8xf32> to vector<1x8x8xf32>
    %183 = vector.shape_cast %182 : vector<1x8x8xf32> to vector<8x8xf32>
    %184 = vector.extract_strided_slice %177 {offsets = [3, 0, 0], sizes = [1, 8, 8], strides = [1, 1, 1]} : vector<4x8x8xf32> to vector<1x8x8xf32>
    %185 = vector.shape_cast %184 : vector<1x8x8xf32> to vector<8x8xf32>
    %186 = tpu.concatenate %179, %181, %183, %185 in 1 : vector<8x8xf32>, vector<8x8xf32>, vector<8x8xf32>, vector<8x8xf32> -> vector<8x32xf32>
    %187 = arith.truncf %186 : vector<8x32xf32> to vector<8x32xbf16>
    %cst_52 = arith.constant dense<0.000000e+00> : vector<8x32xf32>
    %188 = tpu.matmul %187, %128, %cst_52 {dimension_numbers = #tpu.dot_dimension_numbers<[1], [0], [0], [1], [0, 0, 1, 1], [], []>} : vector<8x32xbf16>, vector<32x32xbf16>, vector<8x32xf32> -> vector<8x32xf32>
    %189 = vector.broadcast %129 : vector<1x32xf32> to vector<8x32xf32>
    %190 = arith.addf %188, %189 : vector<8x32xf32>
    %191 = arith.addf %113, %190 : vector<8x32xf32>
    %cst_53 = arith.constant dense<0.000000e+00> : vector<8xf32>
    %192 = vector.multi_reduction <add>, %191, %cst_53 [1] : vector<8x32xf32> to vector<8xf32>
    %193 = vector.shape_cast %192 : vector<8xf32> to vector<8x1xf32>
    %cst_54 = arith.constant 3.200000e+01 : f32
    %194 = vector.broadcast %cst_54 : f32 to vector<8x1xf32>
    %195 = arith.divf %193, %194 : vector<8x1xf32>
    %196 = vector.broadcast %195 : vector<8x1xf32> to vector<8x32xf32>
    %197 = arith.subf %191, %196 : vector<8x32xf32>
    %198 = arith.mulf %197, %197 : vector<8x32xf32>
    %cst_55 = arith.constant dense<0.000000e+00> : vector<8xf32>
    %199 = vector.multi_reduction <add>, %198, %cst_55 [1] : vector<8x32xf32> to vector<8xf32>
    %200 = vector.shape_cast %199 : vector<8xf32> to vector<8x1xf32>
    %cst_56 = arith.constant 3.200000e+01 : f32
    %201 = vector.broadcast %cst_56 : f32 to vector<8x1xf32>
    %202 = arith.divf %200, %201 : vector<8x1xf32>
    %203 = vector.broadcast %195 : vector<8x1xf32> to vector<8x32xf32>
    %204 = arith.subf %191, %203 : vector<8x32xf32>
    %cst_57 = arith.constant 9.99999974E-6 : f32
    %205 = vector.broadcast %cst_57 : f32 to vector<8x1xf32>
    %206 = arith.addf %202, %205 : vector<8x1xf32>
    %207 = math.rsqrt %206 : vector<8x1xf32>
    %208 = vector.broadcast %207 : vector<8x1xf32> to vector<8x32xf32>
    %209 = arith.mulf %204, %208 : vector<8x32xf32>
    %210 = vector.broadcast %130 : vector<1x32xf32> to vector<8x32xf32>
    %211 = arith.mulf %209, %210 : vector<8x32xf32>
    %212 = vector.broadcast %131 : vector<1x32xf32> to vector<8x32xf32>
    %213 = arith.addf %211, %212 : vector<8x32xf32>
    %214 = arith.mulf %213, %7 : vector<8x32xf32>
    %215 = arith.truncf %214 : vector<8x32xf32> to vector<8x32xbf16>
    %c0_58 = arith.constant 0 : index
    %c640_59 = arith.constant 640 : index
    %216 = vector.load %arg6[%c0_58, %c640_59] : memref<32x896xbf16, #tpu.memory_space<vmem>>, vector<32x64xbf16>
    %cst_60 = arith.constant dense<0.000000e+00> : vector<8x64xf32>
    %217 = tpu.matmul %215, %216, %cst_60 {dimension_numbers = #tpu.dot_dimension_numbers<[1], [0], [0], [1], [0, 0, 1, 1], [], []>} : vector<8x32xbf16>, vector<32x64xbf16>, vector<8x64xf32> -> vector<8x64xf32>
    %c0_61 = arith.constant 0 : index
    %c1152 = arith.constant 1152 : index
    %218 = vector.load %arg7[%c0_61, %c1152] : memref<1x1664xf32, #tpu.memory_space<vmem>>, vector<1x64xf32>
    %219 = vector.broadcast %218 : vector<1x64xf32> to vector<8x64xf32>
    %220 = arith.addf %217, %219 : vector<8x64xf32>
    %cst_62 = arith.constant 0.000000e+00 : f32
    %221 = vector.broadcast %cst_62 : f32 to vector<8x64xf32>
    %222 = arith.maximumf %220, %221 : vector<8x64xf32>
    %223 = arith.truncf %222 : vector<8x64xf32> to vector<8x64xbf16>
    %c0_63 = arith.constant 0 : index
    %c768_64 = arith.constant 768 : index
    %224 = vector.load %arg6[%c0_63, %c768_64] : memref<32x896xbf16, #tpu.memory_space<vmem>>, vector<32x64xbf16>
    %cst_65 = arith.constant dense<0.000000e+00> : vector<8x32xf32>
    %225 = tpu.matmul %223, %224, %cst_65 {dimension_numbers = #tpu.dot_dimension_numbers<[1], [1], [0], [0], [0, 0, 1, 0], [], []>} : vector<8x64xbf16>, vector<32x64xbf16>, vector<8x32xf32> -> vector<8x32xf32>
    %c0_66 = arith.constant 0 : index
    %c1280 = arith.constant 1280 : index
    %226 = vector.load %arg7[%c0_66, %c1280] : memref<1x1664xf32, #tpu.memory_space<vmem>>, vector<1x32xf32>
    %227 = vector.broadcast %226 : vector<1x32xf32> to vector<8x32xf32>
    %228 = arith.addf %225, %227 : vector<8x32xf32>
    %229 = arith.addf %214, %228 : vector<8x32xf32>
    %c0_67 = arith.constant 0 : index
    %c1408 = arith.constant 1408 : index
    %230 = vector.load %arg7[%c0_67, %c1408] : memref<1x1664xf32, #tpu.memory_space<vmem>>, vector<1x32xf32>
    %c0_68 = arith.constant 0 : index
    %c1536 = arith.constant 1536 : index
    %231 = vector.load %arg7[%c0_68, %c1536] : memref<1x1664xf32, #tpu.memory_space<vmem>>, vector<1x32xf32>
    %cst_69 = arith.constant dense<0.000000e+00> : vector<8xf32>
    %232 = vector.multi_reduction <add>, %229, %cst_69 [1] : vector<8x32xf32> to vector<8xf32>
    %233 = vector.shape_cast %232 : vector<8xf32> to vector<8x1xf32>
    %cst_70 = arith.constant 3.200000e+01 : f32
    %234 = vector.broadcast %cst_70 : f32 to vector<8x1xf32>
    %235 = arith.divf %233, %234 : vector<8x1xf32>
    %236 = vector.broadcast %235 : vector<8x1xf32> to vector<8x32xf32>
    %237 = arith.subf %229, %236 : vector<8x32xf32>
    %238 = arith.mulf %237, %237 : vector<8x32xf32>
    %cst_71 = arith.constant dense<0.000000e+00> : vector<8xf32>
    %239 = vector.multi_reduction <add>, %238, %cst_71 [1] : vector<8x32xf32> to vector<8xf32>
    %240 = vector.shape_cast %239 : vector<8xf32> to vector<8x1xf32>
    %cst_72 = arith.constant 3.200000e+01 : f32
    %241 = vector.broadcast %cst_72 : f32 to vector<8x1xf32>
    %242 = arith.divf %240, %241 : vector<8x1xf32>
    %243 = vector.broadcast %235 : vector<8x1xf32> to vector<8x32xf32>
    %244 = arith.subf %229, %243 : vector<8x32xf32>
    %cst_73 = arith.constant 9.99999974E-6 : f32
    %245 = vector.broadcast %cst_73 : f32 to vector<8x1xf32>
    %246 = arith.addf %242, %245 : vector<8x1xf32>
    %247 = math.rsqrt %246 : vector<8x1xf32>
    %248 = vector.broadcast %247 : vector<8x1xf32> to vector<8x32xf32>
    %249 = arith.mulf %244, %248 : vector<8x32xf32>
    %250 = vector.broadcast %230 : vector<1x32xf32> to vector<8x32xf32>
    %251 = arith.mulf %249, %250 : vector<8x32xf32>
    %252 = vector.broadcast %231 : vector<1x32xf32> to vector<8x32xf32>
    %253 = arith.addf %251, %252 : vector<8x32xf32>
    %254 = arith.mulf %253, %7 : vector<8x32xf32>
    %c0_74 = arith.constant 0 : index
    %c0_75 = arith.constant 0 : index
    %c0_76 = arith.constant 0 : index
    %255 = vector.load %arg8[%c0_74, %c0_75, %c0_76] : memref<1x8x32xf32, #tpu.memory_space<vmem>>, vector<1x8x32xf32>
    %256 = vector.shape_cast %255 : vector<1x8x32xf32> to vector<8x32xf32>
    %257 = vector.shape_cast %254 : vector<8x32xf32> to vector<1x8x32xf32>
    tpu.vector_store %arg8[%c0_74, %c0_75, %c0_76], %257 {strides = array<i32>} : memref<1x8x32xf32, #tpu.memory_space<vmem>>, vector<1x8x32xf32>,
    return
  }
  func.func @transform_0(%arg0: i32) -> (i32, i32, i32) {
    %c0_i32 = arith.constant 0 : i32
    %c0_i32_0 = arith.constant 0 : i32
    %c0_i32_1 = arith.constant 0 : i32
    return %arg0, %c0_i32, %c0_i32_0 : i32, i32, i32
  }
  func.func @transform_1(%arg0: i32) -> (i32, i32, i32) {
    %c0_i32 = arith.constant 0 : i32
    %c0_i32_0 = arith.constant 0 : i32
    %c0_i32_1 = arith.constant 0 : i32
    return %arg0, %c0_i32, %c0_i32_0 : i32, i32, i32
  }
  func.func @transform_2(%arg0: i32) -> (i32, i32, i32) {
    %c0_i32 = arith.constant 0 : i32
    %c0_i32_0 = arith.constant 0 : i32
    %c0_i32_1 = arith.constant 0 : i32
    return %arg0, %c0_i32, %c0_i32_0 : i32, i32, i32
  }
  func.func @transform_3(%arg0: i32) -> (i32, i32, i32) {
    %c0_i32 = arith.constant 0 : i32
    %c0_i32_0 = arith.constant 0 : i32
    %c0_i32_1 = arith.constant 0 : i32
    return %arg0, %c0_i32, %c0_i32_0 : i32, i32, i32
  }
  func.func @transform_4(%arg0: i32) -> (i32, i32, i32) {
    %c0_i32 = arith.constant 0 : i32
    %c0_i32_0 = arith.constant 0 : i32
    %c0_i32_1 = arith.constant 0 : i32
    return %arg0, %c0_i32, %c0_i32_0 : i32, i32, i32
  }
  func.func @transform_5(%arg0: i32) -> (i32, i32) {
    %c0_i32 = arith.constant 0 : i32
    %c0_i32_0 = arith.constant 0 : i32
    %c0_i32_1 = arith.constant 0 : i32
    return %c0_i32, %c0_i32_0 : i32, i32
  }
  func.func @transform_6(%arg0: i32) -> (i32, i32) {
    %c0_i32 = arith.constant 0 : i32
    %c0_i32_0 = arith.constant 0 : i32
    %c0_i32_1 = arith.constant 0 : i32
    return %c0_i32, %c0_i32_0 : i32, i32
  }
  func.func @transform_7(%arg0: i32) -> (i32, i32, i32) {
    %c0_i32 = arith.constant 0 : i32
    %c0_i32_0 = arith.constant 0 : i32
    %c0_i32_1 = arith.constant 0 : i32
    return %arg0, %c0_i32, %c0_i32_0 : i32, i32, i32
  }
}

</mosaic_0001>

<llo_original>
// kernel: tpu_custom_call.1
$region0: #{tpu_custom_call.1}
  #allocation0 [shape = 'u32[]', space=smem, size = 0x4, offset = 0x4, fixed_abs, tag = 'smem constant byte address 0x4 - core index']
  #allocation1 [shape = 'u32[144,128]{1,0:T(1,128)}', space=vmem, size = 0x12000, scoped, tag = 'internal scratch']
  %s0 = inlined_call_operand.vmem [shape: f32[2,8,32], index: 0, kind: input, shape index: {}]
  %s1 = inlined_call_operand.hbm [shape: f32[2,16,32], index: 1, kind: input, shape index: {}]
  %s2 = inlined_call_operand.hbm [shape: bf16[2,8,8], index: 2, kind: input, shape index: {}]
  %s3 = inlined_call_operand.hbm [shape: bf16[2,8,16], index: 3, kind: input, shape index: {}]
  %s4 = inlined_call_operand.vmem [shape: f32[2,8,1], index: 4, kind: input, shape index: {}]
  %s5 = inlined_call_operand.hbm [shape: bf16[32,896], index: 5, kind: input, shape index: {}]
  %s6 = inlined_call_operand.vmem [shape: f32[1,1664], index: 6, kind: input, shape index: {}]
  %s7 = inlined_call_operand.hbm [shape: f32[2,8,32], index: 7, kind: output, shape index: {}]
  %s8 = sld [smem:[#allocation0]]
  $region77: #{tpu_custom_call.1} parent=0
    _
  %s10 = ssub.s32 1, %s8
  %s11 = scalar_select 0, %s10, %s8
  $region1: #{tpu_custom_call.1} parent=0
    #allocation2 [shape = 'u8[16384]{0}', space=vmem, size = 0x4000, scoped, tag = 'input window, operand 1']
    #allocation3 [shape = 's32[2]{0}', space=sflag, size = 0x8, scoped, tag = 'scoped memory for tpu_custom_call.1']
    #allocation4 [shape = 's32[2]{0}', space=sflag, size = 0x8, scoped, tag = 'scoped memory for tpu_custom_call.1']
    #allocation5 [shape = 'u8[4096]{0}', space=vmem, size = 0x1000, scoped, tag = 'input window, operand 2']
    #allocation6 [shape = 's32[2]{0}', space=sflag, size = 0x8, scoped, tag = 'scoped memory for tpu_custom_call.1']
    #allocation7 [shape = 'u8[4096]{0}', space=vmem, size = 0x1000, scoped, tag = 'input window, operand 3']
    #allocation8 [shape = 'u8[57344]{0}', space=vmem, size = 0xe000, scoped, tag = 'input window, operand 5, single buffered']
    #allocation9 [shape = 's32[1]{0}', space=sflag, size = 0x4, scoped, tag = 'scoped memory for tpu_custom_call.1']
    #allocation10 [shape = 'u8[8192]{0}', space=vmem, size = 0x2000, scoped, tag = 'output window, operand 0']
    %12 = vsyncpa [#allocation3], 0
    %s13 = scalar_lea.sflag [#allocation3], 1
    %14 = vsyncpa %s13, 0
    %15 = vsyncpa [#allocation6], 0
    %s16 = scalar_lea.sflag [#allocation6], 1
    %17 = vsyncpa %s16, 0
    %18 = vsyncpa [#allocation9], 0
    %19 = vsyncpa [#allocation4], 0
    %s20 = scalar_lea.sflag [#allocation4], 1
    %21 = vsyncpa %s20, 0
    loop: start=0, step=1, limit=4
    $region2: #{tpu_custom_call.1} parent=1 // loop_pre_header
      _
    $region3: #{tpu_custom_call.1} parent=1 // loop_header
      %s23 = sphi 0, %s27
      %p24 = scmp.ge.s32.totalorder %s23, 4
      %s33 = sphi 0, %s35
      %s36 = sphi 0, %s33
      %s37 = sphi 0, %s36
      %s53 = sphi 0, %s37
      %s59 = sphi 0, %s61
      %s62 = sphi 0, %s59
      %s63 = sphi 0, %s62
      %s79 = sphi 0, %s63
      %s85 = sphi 0, %s87
      %s88 = sphi 0, %s85
      %s89 = sphi 0, %s88
      %s105 = sphi 0, %s89
      %s111 = sphi 0, %s113
      %s114 = sphi 0, %s111
      %s115 = sphi 0, %s114
      %s131 = sphi 0, %s115
      %s137 = sphi 0, %s139
      %s140 = sphi 0, %s137
      %s141 = sphi 0, %s140
      %s157 = sphi 0, %s141
      %s161 = sphi 0, %s161
      %s163 = sphi 0, %s161
      %s164 = sphi 0, %s163
      %s178 = sphi 0, %s164
      %s182 = sphi 0, %s182
      %s184 = sphi 0, %s182
      %s185 = sphi 0, %s184
      %s199 = sphi 0, %s185
      %s205 = sphi 0, %s207
      %s208 = sphi 0, %s205
      %s209 = sphi 0, %s208
      %s225 = sphi 0, %s209
    $region4: #{tpu_custom_call.1} parent=1 // loop_header_branch
      %26 = sbr.rel (%p24) target = $region8
    $region5: #{tpu_custom_call.1} parent=1 // loop_body
      %s28 = ssub.s32 %s23, 1
      %s29 = ssub.s32 %s23, 2
      %s30 = sadd.s32 %s23, 1
      %s31 = ssub.s32 %s23, %s30
      %p32 = scmp.eq.s32.totalorder %s31, 0
      %s34 = sadd.s32 %s33, 1
      %s35 = scalar_select %p32, %s33, %s34
      %p38 = pneg %p32
      %p39 = scmp.eq.s32.totalorder %s23, 1
      %p40 = por %p38, %p39
      %p41 = scmp.ne.s32.totalorder %s33, %s36
      %p42 = scmp.eq.s32.totalorder %s23, 0
      %p43 = por %p41, %p42
      %p44 = scmp.ne.s32.totalorder %s33, %s36
      %p45 = scmp.eq.s32.totalorder %s28, 1
      %p46 = por %p44, %p45
      %p47 = scmp.ne.s32.totalorder %s36, %s37
      %p48 = scmp.eq.s32.totalorder %s28, 0
      %p49 = por %p47, %p48
      %p50 = scmp.ne.s32.totalorder %s36, %s37
      %p51 = scmp.eq.s32.totalorder %s29, 1
      %p52 = por %p50, %p51
      %p54 = scmp.ne.s32.totalorder %s37, %s53
      %p55 = scmp.eq.s32.totalorder %s29, 0
      %p56 = por %p54, %p55
      %s57 = ssub.s32 %s23, %s30
      %p58 = scmp.eq.s32.totalorder %s57, 0
      %s60 = sadd.s32 %s59, 1
      %s61 = scalar_select %p58, %s59, %s60
      %p64 = pneg %p58
      %p65 = scmp.eq.s32.totalorder %s23, 1
      %p66 = por %p64, %p65
      %p67 = scmp.ne.s32.totalorder %s59, %s62
      %p68 = scmp.eq.s32.totalorder %s23, 0
      %p69 = por %p67, %p68
      %p70 = scmp.ne.s32.totalorder %s59, %s62
      %p71 = scmp.eq.s32.totalorder %s28, 1
      %p72 = por %p70, %p71
      %p73 = scmp.ne.s32.totalorder %s62, %s63
      %p74 = scmp.eq.s32.totalorder %s28, 0
      %p75 = por %p73, %p74
      %p76 = scmp.ne.s32.totalorder %s62, %s63
      %p77 = scmp.eq.s32.totalorder %s29, 1
      %p78 = por %p76, %p77
      %p80 = scmp.ne.s32.totalorder %s63, %s79
      %p81 = scmp.eq.s32.totalorder %s29, 0
      %p82 = por %p80, %p81
      %s83 = ssub.s32 %s23, %s30
      %p84 = scmp.eq.s32.totalorder %s83, 0
      %s86 = sadd.s32 %s85, 1
      %s87 = scalar_select %p84, %s85, %s86
      %p90 = pneg %p84
      %p91 = scmp.eq.s32.totalorder %s23, 1
      %p92 = por %p90, %p91
      %p93 = scmp.ne.s32.totalorder %s85, %s88
      %p94 = scmp.eq.s32.totalorder %s23, 0
      %p95 = por %p93, %p94
      %p96 = scmp.ne.s32.totalorder %s85, %s88
      %p97 = scmp.eq.s32.totalorder %s28, 1
      %p98 = por %p96, %p97
      %p99 = scmp.ne.s32.totalorder %s88, %s89
      %p100 = scmp.eq.s32.totalorder %s28, 0
      %p101 = por %p99, %p100
      %p102 = scmp.ne.s32.totalorder %s88, %s89
      %p103 = scmp.eq.s32.totalorder %s29, 1
      %p104 = por %p102, %p103
      %p106 = scmp.ne.s32.totalorder %s89, %s105
      %p107 = scmp.eq.s32.totalorder %s29, 0
      %p108 = por %p106, %p107
      %s109 = ssub.s32 %s23, %s30
      %p110 = scmp.eq.s32.totalorder %s109, 0
      %s112 = sadd.s32 %s111, 1
      %s113 = scalar_select %p110, %s111, %s112
      %p116 = pneg %p110
      %p117 = scmp.eq.s32.totalorder %s23, 1
      %p118 = por %p116, %p117
      %p119 = scmp.ne.s32.totalorder %s111, %s114
      %p120 = scmp.eq.s32.totalorder %s23, 0
      %p121 = por %p119, %p120
      %p122 = scmp.ne.s32.totalorder %s111, %s114
      %p123 = scmp.eq.s32.totalorder %s28, 1
      %p124 = por %p122, %p123
      %p125 = scmp.ne.s32.totalorder %s114, %s115
      %p126 = scmp.eq.s32.totalorder %s28, 0
      %p127 = por %p125, %p126
      %p128 = scmp.ne.s32.totalorder %s114, %s115
      %p129 = scmp.eq.s32.totalorder %s29, 1
      %p130 = por %p128, %p129
      %p132 = scmp.ne.s32.totalorder %s115, %s131
      %p133 = scmp.eq.s32.totalorder %s29, 0
      %p134 = por %p132, %p133
      %s135 = ssub.s32 %s23, %s30
      %p136 = scmp.eq.s32.totalorder %s135, 0
      %s138 = sadd.s32 %s137, 1
      %s139 = scalar_select %p136, %s137, %s138
      %p142 = pneg %p136
      %p143 = scmp.eq.s32.totalorder %s23, 1
      %p144 = por %p142, %p143
      %p145 = scmp.ne.s32.totalorder %s137, %s140
      %p146 = scmp.eq.s32.totalorder %s23, 0
      %p147 = por %p145, %p146
      %p148 = scmp.ne.s32.totalorder %s137, %s140
      %p149 = scmp.eq.s32.totalorder %s28, 1
      %p150 = por %p148, %p149
      %p151 = scmp.ne.s32.totalorder %s140, %s141
      %p152 = scmp.eq.s32.totalorder %s28, 0
      %p153 = por %p151, %p152
      %p154 = scmp.ne.s32.totalorder %s140, %s141
      %p155 = scmp.eq.s32.totalorder %s29, 1
      %p156 = por %p154, %p155
      %p158 = scmp.ne.s32.totalorder %s141, %s157
      %p159 = scmp.eq.s32.totalorder %s29, 0
      %p160 = por %p158, %p159
      %s162 = sadd.s32 %s161, 1
      %p165 = scmp.eq.s32.totalorder %s23, 1
      %p166 = scmp.ne.s32.totalorder %s161, %s163
      %p167 = scmp.eq.s32.totalorder %s23, 0
      %p168 = por %p166, %p167
      %p169 = scmp.ne.s32.totalorder %s161, %s163
      %p170 = scmp.eq.s32.totalorder %s28, 1
      %p171 = por %p169, %p170
      %p172 = scmp.ne.s32.totalorder %s163, %s164
      %p173 = scmp.eq.s32.totalorder %s28, 0
      %p174 = por %p172, %p173
      %p175 = scmp.ne.s32.totalorder %s163, %s164
      %p176 = scmp.eq.s32.totalorder %s29, 1
      %p177 = por %p175, %p176
      %p179 = scmp.ne.s32.totalorder %s164, %s178
      %p180 = scmp.eq.s32.totalorder %s29, 0
      %p181 = por %p179, %p180
      %s183 = sadd.s32 %s182, 1
      %p186 = scmp.eq.s32.totalorder %s23, 1
      %p187 = scmp.ne.s32.totalorder %s182, %s184
      %p188 = scmp.eq.s32.totalorder %s23, 0
      %p189 = por %p187, %p188
      %p190 = scmp.ne.s32.totalorder %s182, %s184
      %p191 = scmp.eq.s32.totalorder %s28, 1
      %p192 = por %p190, %p191
      %p193 = scmp.ne.s32.totalorder %s184, %s185
      %p194 = scmp.eq.s32.totalorder %s28, 0
      %p195 = por %p193, %p194
      %p196 = scmp.ne.s32.totalorder %s184, %s185
      %p197 = scmp.eq.s32.totalorder %s29, 1
      %p198 = por %p196, %p197
      %p200 = scmp.ne.s32.totalorder %s185, %s199
      %p201 = scmp.eq.s32.totalorder %s29, 0
      %p202 = por %p200, %p201
      %s203 = ssub.s32 %s23, %s30
      %p204 = scmp.eq.s32.totalorder %s203, 0
      %s206 = sadd.s32 %s205, 1
      %s207 = scalar_select %p204, %s205, %s206
      %p210 = pneg %p204
      %p211 = scmp.eq.s32.totalorder %s23, 1
      %p212 = por %p210, %p211
      %p213 = scmp.ne.s32.totalorder %s205, %s208
      %p214 = scmp.eq.s32.totalorder %s23, 0
      %p215 = por %p213, %p214
      %p216 = scmp.ne.s32.totalorder %s205, %s208
      %p217 = scmp.eq.s32.totalorder %s28, 1
      %p218 = por %p216, %p217
      %p219 = scmp.ne.s32.totalorder %s208, %s209
      %p220 = scmp.eq.s32.totalorder %s28, 0
      %p221 = por %p219, %p220
      %p222 = scmp.ne.s32.totalorder %s208, %s209
      %p223 = scmp.eq.s32.totalorder %s29, 1
      %p224 = por %p222, %p223
      %p226 = scmp.ne.s32.totalorder %s209, %s225
      %p227 = scmp.eq.s32.totalorder %s29, 0
      %p228 = por %p226, %p227
      %p229 = scmp.le.s32.totalorder 1, %s23
      %p230 = scmp.lt.s32.totalorder %s23, 3
      %p231 = pnand %p229, %p230
      %p232 = pneg %p231
      // Predicated region
      $region9: #{tpu_custom_call.1} parent=5 // pred_check
        _
      $region10: #{tpu_custom_call.1} parent=5 // pred_check_branch
        %234 = sbr.rel (%p231) target = $region12
      $region11: #{tpu_custom_call.1} parent=5 // pred_region
        %s235 = ssub.s32 %s23, 1
        // Predicated region
        $region13: #{tpu_custom_call.1} parent=11 // pred_check
          %p236 = pneg %p174
        $region14: #{tpu_custom_call.1} parent=11 // pred_check_branch
          %238 = sbr.rel (%p236) target = $region16
        $region15: #{tpu_custom_call.1} parent=11 // pred_region
          %s240 = ssub.s32 1792, 1792
          %241 = vsyncadd [#allocation9], %s240
          %s242 = sshll.u32 [#allocation8], 4
          %s243 = int_to_ptr.vmem [resolvable:$true] %s242
          %248 = dma.hbm_to_vmem [thread:$0]  %s5, 1792, %s243, [#allocation9], 448, 448, 28
        $region16: #{tpu_custom_call.1} parent=11 // pred_fallthru
          _
        // Predicated region
        $region17: #{tpu_custom_call.1} parent=11 // pred_check
          %p249 = pneg %p195
        $region18: #{tpu_custom_call.1} parent=11 // pred_check_branch
          %251 = sbr.rel (%p249) target = $region20
        $region19: #{tpu_custom_call.1} parent=11 // pred_region
          _
        $region20: #{tpu_custom_call.1} parent=11 // pred_fallthru
          _
      $region12: #{tpu_custom_call.1} parent=5 // pred_fallthru
        _
      %p252 = scmp.lt.s32.totalorder %s23, 2
      // Predicated region
      $region21: #{tpu_custom_call.1} parent=5 // pred_check
        %p253 = pneg %p252
      $region22: #{tpu_custom_call.1} parent=5 // pred_check_branch
        %255 = sbr.rel (%p253) target = $region24
      $region23: #{tpu_custom_call.1} parent=5 // pred_region
        // Predicated region
        $region25: #{tpu_custom_call.1} parent=23 // pred_check
          %p256 = pneg %p43
        $region26: #{tpu_custom_call.1} parent=23 // pred_check_branch
          %258 = sbr.rel (%p256) target = $region28
        $region27: #{tpu_custom_call.1} parent=23 // pred_region
          %p259 = scmp.lt.s32.totalorder %s23, 1
          %s260 = scalar_select %p259, %s23, 1
          %s261 = smul.addr %s260, 8
          %s262 = scalar_lea.vmem %s0, %s261
        $region28: #{tpu_custom_call.1} parent=23 // pred_fallthru
          _
        // Predicated region
        $region29: #{tpu_custom_call.1} parent=23 // pred_check
          %p263 = pneg %p69
        $region30: #{tpu_custom_call.1} parent=23 // pred_check_branch
          %265 = sbr.rel (%p263) target = $region32
        $region31: #{tpu_custom_call.1} parent=23 // pred_region
          %s266 = sand.u32 %s59, 1
          %s267 = scalar_lea.sflag [#allocation3], %s266
          %s268 = sand.u32 %s59, 1
          %s269 = smul.addr %s268, 16
          %s270 = scalar_lea.vmem [#allocation2], %s269
          %s272 = ssub.s32 256, 256
          %273 = vsyncadd %s267, %s272
          %s274 = smul.addr %s23, 2
          %s275 = smul.addr %s274, 128
          %s276 = scalar_lea.hbm %s1, %s275
          %s277 = sshll.u32 %s270, 4
          %s278 = int_to_ptr.vmem [resolvable:$true] %s277
          %283 = dma.hbm_to_vmem [thread:$0]  %s276, 256, %s278, %s267, 128, 128, 8
        $region32: #{tpu_custom_call.1} parent=23 // pred_fallthru
          _
        // Predicated region
        $region33: #{tpu_custom_call.1} parent=23 // pred_check
          %p284 = pneg %p95
        $region34: #{tpu_custom_call.1} parent=23 // pred_check_branch
          %286 = sbr.rel (%p284) target = $region36
        $region35: #{tpu_custom_call.1} parent=23 // pred_region
          %s287 = sand.u32 %s23, 1
          %s288 = scalar_lea.sflag [#allocation6], %s287
          %s289 = sand.u32 %s85, 1
          %s290 = smul.addr %s289, 4
          %s291 = scalar_lea.vmem [#allocation5], %s290
          %s293 = ssub.s32 64, 64
          %294 = vsyncadd %s288, %s293
          %s295 = smul.addr %s23, 64
          %s296 = scalar_lea.hbm %s2, %s295
          %s298 = sshll.u32 %s291, 4
          %s299 = int_to_ptr.vmem [resolvable:$true] %s298
          %301 = dma.hbm_to_vmem [thread:$0]  %s296, 64, %s299, %s288
        $region36: #{tpu_custom_call.1} parent=23 // pred_fallthru
          _
        // Predicated region
        $region37: #{tpu_custom_call.1} parent=23 // pred_check
          %p302 = pneg %p121
        $region38: #{tpu_custom_call.1} parent=23 // pred_check_branch
          %304 = sbr.rel (%p302) target = $region40
        $region39: #{tpu_custom_call.1} parent=23 // pred_region
          %s305 = sand.u32 %s23, 1
          %s306 = scalar_lea.sflag [#allocation6], %s305
          %s307 = sand.u32 %s111, 1
          %s308 = smul.addr %s307, 4
          %s309 = scalar_lea.vmem [#allocation7], %s308
          %s311 = ssub.s32 64, 64
          %312 = vsyncadd %s306, %s311
          %s313 = smul.addr %s23, 64
          %s314 = scalar_lea.hbm %s3, %s313
          %s316 = sshll.u32 %s309, 4
          %s317 = int_to_ptr.vmem [resolvable:$true] %s316
          %319 = dma.hbm_to_vmem [thread:$0]  %s314, 64, %s317, %s306
        $region40: #{tpu_custom_call.1} parent=23 // pred_fallthru
          _
        // Predicated region
        $region41: #{tpu_custom_call.1} parent=23 // pred_check
          %p320 = pneg %p147
        $region42: #{tpu_custom_call.1} parent=23 // pred_check_branch
          %322 = sbr.rel (%p320) target = $region44
        $region43: #{tpu_custom_call.1} parent=23 // pred_region
          %p323 = scmp.lt.s32.totalorder %s23, 1
          %s324 = scalar_select %p323, %s23, 1
          %s325 = smul.addr %s324, 8
          %s326 = scalar_lea.vmem %s4, %s325
        $region44: #{tpu_custom_call.1} parent=23 // pred_fallthru
          _
      $region24: #{tpu_custom_call.1} parent=5 // pred_fallthru
        _
      %p327 = scmp.le.s32.totalorder 1, %s23
      %p328 = scmp.lt.s32.totalorder %s23, 3
      %p329 = pnand %p327, %p328
      %p330 = pneg %p329
      // Predicated region
      $region45: #{tpu_custom_call.1} parent=5 // pred_check
        _
      $region46: #{tpu_custom_call.1} parent=5 // pred_check_branch
        %332 = sbr.rel (%p329) target = $region48
      $region47: #{tpu_custom_call.1} parent=5 // pred_region
        %s333 = ssub.s32 %s23, 1
        %s334 = sand.u32 %s62, 1
        %s335 = scalar_lea.sflag [#allocation3], %s334
        %s336 = sand.u32 %s62, 1
        %s337 = smul.addr %s336, 16
        %s338 = scalar_lea.vmem [#allocation2], %s337
        // Predicated region
        $region49: #{tpu_custom_call.1} parent=47 // pred_check
          %p339 = pneg %p75
        $region50: #{tpu_custom_call.1} parent=47 // pred_check_branch
          %341 = sbr.rel (%p339) target = $region52
        $region51: #{tpu_custom_call.1} parent=47 // pred_region
          %342 = dma.done %s335, 256
        $region52: #{tpu_custom_call.1} parent=47 // pred_fallthru
          _
        %s343 = sand.u32 %s28, 1
        %s344 = scalar_lea.sflag [#allocation6], %s343
        %s345 = sand.u32 %s88, 1
        %s346 = smul.addr %s345, 4
        %s347 = scalar_lea.vmem [#allocation5], %s346
        // Predicated region
        $region53: #{tpu_custom_call.1} parent=47 // pred_check
          %p348 = pneg %p101
        $region54: #{tpu_custom_call.1} parent=47 // pred_check_branch
          %350 = sbr.rel (%p348) target = $region56
        $region55: #{tpu_custom_call.1} parent=47 // pred_region
          %351 = dma.done %s344, 64
        $region56: #{tpu_custom_call.1} parent=47 // pred_fallthru
          _
        %s352 = sand.u32 %s28, 1
        %s353 = scalar_lea.sflag [#allocation6], %s352
        %s354 = sand.u32 %s114, 1
        %s355 = smul.addr %s354, 4
        %s356 = scalar_lea.vmem [#allocation7], %s355
        // Predicated region
        $region57: #{tpu_custom_call.1} parent=47 // pred_check
          %p357 = pneg %p127
        $region58: #{tpu_custom_call.1} parent=47 // pred_check_branch
          %359 = sbr.rel (%p357) target = $region60
        $region59: #{tpu_custom_call.1} parent=47 // pred_region
          %360 = dma.done %s353, 64
        $region60: #{tpu_custom_call.1} parent=47 // pred_fallthru
          _
        // Predicated region
        $region61: #{tpu_custom_call.1} parent=47 // pred_check
          %p361 = pneg %p174
        $region62: #{tpu_custom_call.1} parent=47 // pred_check_branch
          %363 = sbr.rel (%p361) target = $region64
        $region63: #{tpu_custom_call.1} parent=47 // pred_region
          %364 = dma.done [#allocation9], 1792
        $region64: #{tpu_custom_call.1} parent=47 // pred_fallthru
          _
        %p365 = scmp.lt.s32.totalorder %s28, 1
        %s366 = scalar_select %p365, %s28, 1
        %s367 = smul.addr %s366, 8
        %s368 = scalar_lea.vmem %s0, %s367
        %p369 = pneg %p49
        %p370 = pneg %p46
        %s371 = sand.u32 %s62, 1
        %s372 = scalar_lea.sflag [#allocation3], %s371
        %s373 = sand.u32 %s62, 1
        %s374 = smul.addr %s373, 16
        %s375 = scalar_lea.vmem [#allocation2], %s374
        %p376 = pneg %p75
        %p377 = pneg %p72
        %s378 = sand.u32 %s28, 1
        %s379 = scalar_lea.sflag [#allocation6], %s378
        %s380 = sand.u32 %s88, 1
        %s381 = smul.addr %s380, 4
        %s382 = scalar_lea.vmem [#allocation5], %s381
        %p383 = pneg %p101
        %p384 = pneg %p98
        %s385 = sand.u32 %s28, 1
        %s386 = scalar_lea.sflag [#allocation6], %s385
        %s387 = sand.u32 %s114, 1
        %s388 = smul.addr %s387, 4
        %s389 = scalar_lea.vmem [#allocation7], %s388
        %p390 = pneg %p127
        %p391 = pneg %p124
        %p392 = scmp.lt.s32.totalorder %s28, 1
        %s393 = scalar_select %p392, %s28, 1
        %s394 = smul.addr %s393, 8
        %s395 = scalar_lea.vmem %s4, %s394
        %p396 = pneg %p153
        %p397 = pneg %p150
        %p398 = pneg %p174
        %p399 = pneg %p171
        %p400 = pneg %p195
        %p401 = pneg %p192
        %p402 = pneg %p221
        %p403 = pneg %p218
        %s404 = sand.u32 %s208, 1
        %s405 = scalar_lea.sflag [#allocation4], %s404
        %s406 = sand.u32 %s208, 1
        %s407 = smul.addr %s406, 8
        %s408 = scalar_lea.vmem [#allocation10], %s407
        %p409 = scmp.lt.s32.totalorder %s28, 1
        %s410 = scalar_select %p409, %s28, 1
        %s411 = smul.addr %s410, 8
        %s412 = scalar_lea.vmem %s0, %s411
        %p413 = scmp.lt.s32.totalorder %s28, 1
        %s414 = scalar_select %p413, %s28, 1
        %s415 = smul.addr %s414, 8
        %s416 = scalar_lea.vmem %s4, %s415
        %v418 = vld [vmem:[%s412] sm:$0xff]
        %v419 = vld [vmem:[%s338] sm:$0xff]
        %v420 = vld [vmem:[%s338 + $0x8] sm:$0xff]
        %v421 = vld [vmem:[%s416] sm:$0xff]
        %423 = vset.pattern.permute.xlu0 0
        %424 = vperm.xlu0 %423, %v421
        %v425 = vpop.permute.xlu0 %424
        %v427 = vld [vmem:[%s347] sm:$0xf]
        %v428 = vunpack.c.l.bf16 %v427
        %v429 = vmul.f32 %v428, -1e+09
        %v430 = vld [vmem:[%s356] sm:$0xf]
        %v431 = vunpack.c.l.bf16 %v430
        %v432 = vmul.f32 %v431, -1e+09
        %v433 = vpack.c.bf16 %v418, %v418
        %v434 = vld [vmem:[#allocation8] sm:$0xf]
        %v435 = vld [vmem:[#allocation8 + $0x1c] sm:$0xf]
        %v436 = vld [vmem:[#allocation8 + $0x38] sm:$0xf]
        %v437 = vld [vmem:[#allocation8 + $0x54] sm:$0xf]
        %v438 = vld [vmem:[%s6] sm:$0x1]
        %v440 = vlaneseq
        %v441 = vshrl.u32 %v440, 7
        %v442 = vsub.s32 0, %v441
        %v443 = vrot.slane %v438, %v442
        %v449 = vunpack.c.l.b16 %v434
        %v450 = vunpack.c.l.b16 %v435
        %v451 = vunpack.c.l.b16 %v436
        %v452 = vunpack.c.l.b16 %v437
        %v453 = vpack.c.b16 %v450, %v449
        %v454 = vpack.c.b16 %v452, %v451
        %vm457 = vcmask 261120
        %v459 = vsel %vm457, %v433, 0
        %461 = vmatprep.subr.bf16.mxu0 0
        %462 = vmatpush1.bf16.msra.mxu0 %v453
        %463 = vmatprep.subr.bf16.mxu0 0
        %464 = vmatpush1.bf16.msra.mxu0 %v454
        %465 = vmatprep.subr.bf16.mxu0 0
        %466 = vmatpush1.bf16.msra.mxu0 0
        %467 = vmatprep.subr.bf16.mxu0 0
        %468 = vmatpush1.bf16.msra.mxu0 0
        %469 = vmatprep.subr.bf16.mxu0 0
        %470 = vmatpush1.bf16.msra.mxu0 0
        %471 = vmatprep.subr.bf16.mxu0 0
        %472 = vmatpush1.bf16.msra.mxu0 0
        %473 = vmatprep.subr.bf16.mxu0 0
        %474 = vmatpush1.bf16.msra.mxu0 0
        %475 = vmatprep.subr.bf16.mxu0 0
        %476 = vmatpush1.bf16.msra.mxu0 0
        %477 = vmatprep.subr.bf16.mxu0 0
        %478 = vmatpush1.bf16.msra.mxu0 0
        %479 = vmatprep.subr.bf16.mxu0 0
        %480 = vmatpush1.bf16.msra.mxu0 0
        %481 = vmatprep.subr.bf16.mxu0 0
        %482 = vmatpush1.bf16.msra.mxu0 0
        %483 = vmatprep.subr.bf16.mxu0 0
        %484 = vmatpush1.bf16.msra.mxu0 0
        %485 = vmatprep.subr.bf16.mxu0 0
        %486 = vmatpush1.bf16.msra.mxu0 0
        %487 = vmatprep.subr.bf16.mxu0 0
        %488 = vmatpush1.bf16.msra.mxu0 0
        %489 = vmatprep.subr.bf16.mxu0 0
        %490 = vmatpush1.bf16.msra.mxu0 0
        %491 = vmatprep.subr.bf16.mxu0 0
        %492 = vmatpush1.bf16.msra.mxu0 0
        %493 = vmatprep.mubr.bf16.mxu0 0
        %494 = vmatmul.mubr.bf16.gmra.mrb[0].mxu0 %v459
        %v495 = vpop.f32.mrb[0].mxu0
        %v496 = vadd.f32 %v443, %v495
        %v497 = vpop.f32.mrb[0].mxu0
        %v498 = vpop.f32.mrb[0].mxu0
        %v499 = vpop.f32.mrb[0].mxu0
        %500 = vdwg.mxu0
        %v501 = vld [vmem:[#allocation8 + $0x4] sm:$0xf]
        %v502 = vld [vmem:[#allocation8 + $0x20] sm:$0xf]
        %v503 = vld [vmem:[#allocation8 + $0x3c] sm:$0xf]
        %v504 = vld [vmem:[#allocation8 + $0x58] sm:$0xf]
        %v505 = vld [vmem:[%s6 + $0x1] sm:$0x1]
        %v506 = vld [vmem:[%s6 + $0x2] sm:$0x1]
        %v507 = vld [vmem:[%s6 + $0x3] sm:$0x1]
        %509 = vrot.lane.b32.xlu0 %v496, 120
        %v510 = vpop.permute.xlu0 %509
        %512 = vrot.lane.b32.xlu0 %v496, 112
        %v513 = vpop.permute.xlu0 %512
        %515 = vrot.lane.b32.xlu0 %v496, 104
        %v516 = vpop.permute.xlu0 %515
        %v518 = vpack.c.bf16 %v496, %v496
        %v519 = vpack.c.bf16 %v510, %v510
        %v520 = vpack.c.bf16 %v513, %v513
        %v521 = vpack.c.bf16 %v516, %v516
        %523 = vrot.lane.b32.xlu0 %v518, 96
        %v524 = vpop.permute.xlu0 %523
        %vm525 = vcmask 64512
        %v527 = vsel %vm525, %v518, 0
        %v530 = vsel %vm525, %v524, 0
        %532 = vmatprep.subr.bf16.mxu0 0
        %533 = vmatpush1.bf16.xpose.msra.mxu0 %v530
        %534 = vmatprep.subr.bf16.mxu0 0
        %535 = vmatpush1.bf16.xpose.msra.mxu0 0
        %536 = vmatprep.subr.bf16.mxu0 0
        %537 = vmatpush1.bf16.xpose.msra.mxu0 0
        %538 = vmatprep.subr.bf16.mxu0 0
        %539 = vmatpush1.bf16.xpose.msra.mxu0 0
        %540 = vmatprep.subr.bf16.mxu0 0
        %541 = vmatpush1.bf16.xpose.msra.mxu0 0
        %542 = vmatprep.subr.bf16.mxu0 0
        %543 = vmatpush1.bf16.xpose.msra.mxu0 0
        %544 = vmatprep.subr.bf16.mxu0 0
        %545 = vmatpush1.bf16.xpose.msra.mxu0 0
        %546 = vmatprep.subr.bf16.mxu0 0
        %547 = vmatpush1.bf16.xpose.msra.mxu0 0
        %548 = vmatprep.subr.bf16.mxu0 0
        %549 = vmatpush1.bf16.xpose.msra.mxu0 0
        %550 = vmatprep.subr.bf16.mxu0 0
        %551 = vmatpush1.bf16.xpose.msra.mxu0 0
        %552 = vmatprep.subr.bf16.mxu0 0
        %553 = vmatpush1.bf16.xpose.msra.mxu0 0
        %554 = vmatprep.subr.bf16.mxu0 0
        %555 = vmatpush1.bf16.xpose.msra.mxu0 0
        %556 = vmatprep.subr.bf16.mxu0 0
        %557 = vmatpush1.bf16.xpose.msra.mxu0 0
        %558 = vmatprep.subr.bf16.mxu0 0
        %559 = vmatpush1.bf16.xpose.msra.mxu0 0
        %560 = vmatprep.subr.bf16.mxu0 0
        %561 = vmatpush1.bf16.xpose.msra.mxu0 0
        %562 = vmatprep.subr.bf16.mxu0 0
        %563 = vmatpush1.bf16.xpose.msra.mxu0 0
        %564 = vmatprep.mubr.bf16.mxu0 0
        %565 = vmatmul.mubr.bf16.gmra.mrb[0].mxu0 %v527
        %v566 = vpop.f32.mrb[0].mxu0
        %v567 = vadd.f32 %v429, %v566
        %v568 = vpop.f32.mrb[0].mxu0
        %v569 = vpop.f32.mrb[0].mxu0
        %v570 = vpop.f32.mrb[0].mxu0
        %571 = vdwg.mxu0
        %573 = vrot.lane.b32.xlu0 %v519, 96
        %v574 = vpop.permute.xlu0 %573
        %v576 = vsel %vm525, %v519, 0
        %v579 = vsel %vm525, %v574, 0
        %581 = vmatprep.subr.bf16.mxu0 0
        %582 = vmatpush1.bf16.xpose.msra.mxu0 %v579
        %583 = vmatprep.subr.bf16.mxu0 0
        %584 = vmatpush1.bf16.xpose.msra.mxu0 0
        %585 = vmatprep.subr.bf16.mxu0 0
        %586 = vmatpush1.bf16.xpose.msra.mxu0 0
        %587 = vmatprep.subr.bf16.mxu0 0
        %588 = vmatpush1.bf16.xpose.msra.mxu0 0
        %589 = vmatprep.subr.bf16.mxu0 0
        %590 = vmatpush1.bf16.xpose.msra.mxu0 0
        %591 = vmatprep.subr.bf16.mxu0 0
        %592 = vmatpush1.bf16.xpose.msra.mxu0 0
        %593 = vmatprep.subr.bf16.mxu0 0
        %594 = vmatpush1.bf16.xpose.msra.mxu0 0
        %595 = vmatprep.subr.bf16.mxu0 0
        %596 = vmatpush1.bf16.xpose.msra.mxu0 0
        %597 = vmatprep.subr.bf16.mxu0 0
        %598 = vmatpush1.bf16.xpose.msra.mxu0 0
        %599 = vmatprep.subr.bf16.mxu0 0
        %600 = vmatpush1.bf16.xpose.msra.mxu0 0
        %601 = vmatprep.subr.bf16.mxu0 0
        %602 = vmatpush1.bf16.xpose.msra.mxu0 0
        %603 = vmatprep.subr.bf16.mxu0 0
        %604 = vmatpush1.bf16.xpose.msra.mxu0 0
        %605 = vmatprep.subr.bf16.mxu0 0
        %606 = vmatpush1.bf16.xpose.msra.mxu0 0
        %607 = vmatprep.subr.bf16.mxu0 0
        %608 = vmatpush1.bf16.xpose.msra.mxu0 0
        %609 = vmatprep.subr.bf16.mxu0 0
        %610 = vmatpush1.bf16.xpose.msra.mxu0 0
        %611 = vmatprep.subr.bf16.mxu0 0
        %612 = vmatpush1.bf16.xpose.msra.mxu0 0
        %613 = vmatprep.mubr.bf16.mxu0 0
        %614 = vmatmul.mubr.bf16.gmra.mrb[0].mxu0 %v576
        %v615 = vpop.f32.mrb[0].mxu0
        %v616 = vadd.f32 %v429, %v615
        %v617 = vpop.f32.mrb[0].mxu0
        %v618 = vpop.f32.mrb[0].mxu0
        %v619 = vpop.f32.mrb[0].mxu0
        %620 = vdwg.mxu0
        %622 = vrot.lane.b32.xlu0 %v520, 96
        %v623 = vpop.permute.xlu0 %622
        %v625 = vsel %vm525, %v520, 0
        %v628 = vsel %vm525, %v623, 0
        %630 = vmatprep.subr.bf16.mxu0 0
        %631 = vmatpush1.bf16.xpose.msra.mxu0 %v628
        %632 = vmatprep.subr.bf16.mxu0 0
        %633 = vmatpush1.bf16.xpose.msra.mxu0 0
        %634 = vmatprep.subr.bf16.mxu0 0
        %635 = vmatpush1.bf16.xpose.msra.mxu0 0
        %636 = vmatprep.subr.bf16.mxu0 0
        %637 = vmatpush1.bf16.xpose.msra.mxu0 0
        %638 = vmatprep.subr.bf16.mxu0 0
        %639 = vmatpush1.bf16.xpose.msra.mxu0 0
        %640 = vmatprep.subr.bf16.mxu0 0
        %641 = vmatpush1.bf16.xpose.msra.mxu0 0
        %642 = vmatprep.subr.bf16.mxu0 0
        %643 = vmatpush1.bf16.xpose.msra.mxu0 0
        %644 = vmatprep.subr.bf16.mxu0 0
        %645 = vmatpush1.bf16.xpose.msra.mxu0 0
        %646 = vmatprep.subr.bf16.mxu0 0
        %647 = vmatpush1.bf16.xpose.msra.mxu0 0
        %648 = vmatprep.subr.bf16.mxu0 0
        %649 = vmatpush1.bf16.xpose.msra.mxu0 0
        %650 = vmatprep.subr.bf16.mxu0 0
        %651 = vmatpush1.bf16.xpose.msra.mxu0 0
        %652 = vmatprep.subr.bf16.mxu0 0
        %653 = vmatpush1.bf16.xpose.msra.mxu0 0
        %654 = vmatprep.subr.bf16.mxu0 0
        %655 = vmatpush1.bf16.xpose.msra.mxu0 0
        %656 = vmatprep.subr.bf16.mxu0 0
        %657 = vmatpush1.bf16.xpose.msra.mxu0 0
        %658 = vmatprep.subr.bf16.mxu0 0
        %659 = vmatpush1.bf16.xpose.msra.mxu0 0
        %660 = vmatprep.subr.bf16.mxu0 0
        %661 = vmatpush1.bf16.xpose.msra.mxu0 0
        %662 = vmatprep.mubr.bf16.mxu0 0
        %663 = vmatmul.mubr.bf16.gmra.mrb[0].mxu0 %v625
        %v664 = vpop.f32.mrb[0].mxu0
        %v665 = vadd.f32 %v429, %v664
        %v666 = vpop.f32.mrb[0].mxu0
        %v667 = vpop.f32.mrb[0].mxu0
        %v668 = vpop.f32.mrb[0].mxu0
        %669 = vdwg.mxu0
        %671 = vrot.lane.b32.xlu0 %v521, 96
        %v672 = vpop.permute.xlu0 %671
        %v674 = vsel %vm525, %v521, 0
        %v677 = vsel %vm525, %v672, 0
        %679 = vmatprep.subr.bf16.mxu0 0
        %680 = vmatpush1.bf16.xpose.msra.mxu0 %v677
        %681 = vmatprep.subr.bf16.mxu0 0
        %682 = vmatpush1.bf16.xpose.msra.mxu0 0
        %683 = vmatprep.subr.bf16.mxu0 0
        %684 = vmatpush1.bf16.xpose.msra.mxu0 0
        %685 = vmatprep.subr.bf16.mxu0 0
        %686 = vmatpush1.bf16.xpose.msra.mxu0 0
        %687 = vmatprep.subr.bf16.mxu0 0
        %688 = vmatpush1.bf16.xpose.msra.mxu0 0
        %689 = vmatprep.subr.bf16.mxu0 0
        %690 = vmatpush1.bf16.xpose.msra.mxu0 0
        %691 = vmatprep.subr.bf16.mxu0 0
        %692 = vmatpush1.bf16.xpose.msra.mxu0 0
        %693 = vmatprep.subr.bf16.mxu0 0
        %694 = vmatpush1.bf16.xpose.msra.mxu0 0
        %695 = vmatprep.subr.bf16.mxu0 0
        %696 = vmatpush1.bf16.xpose.msra.mxu0 0
        %697 = vmatprep.subr.bf16.mxu0 0
        %698 = vmatpush1.bf16.xpose.msra.mxu0 0
        %699 = vmatprep.subr.bf16.mxu0 0
        %700 = vmatpush1.bf16.xpose.msra.mxu0 0
        %701 = vmatprep.subr.bf16.mxu0 0
        %702 = vmatpush1.bf16.xpose.msra.mxu0 0
        %703 = vmatprep.subr.bf16.mxu0 0
        %704 = vmatpush1.bf16.xpose.msra.mxu0 0
        %705 = vmatprep.subr.bf16.mxu0 0
        %706 = vmatpush1.bf16.xpose.msra.mxu0 0
        %707 = vmatprep.subr.bf16.mxu0 0
        %708 = vmatpush1.bf16.xpose.msra.mxu0 0
        %709 = vmatprep.subr.bf16.mxu0 0
        %710 = vmatpush1.bf16.xpose.msra.mxu0 0
        %711 = vmatprep.mubr.bf16.mxu0 0
        %712 = vmatmul.mubr.bf16.gmra.mrb[0].mxu0 %v674
        %v713 = vpop.f32.mrb[0].mxu0
        %v714 = vadd.f32 %v429, %v713
        %v715 = vpop.f32.mrb[0].mxu0
        %v716 = vpop.f32.mrb[0].mxu0
        %v717 = vpop.f32.mrb[0].mxu0
        %718 = vdwg.mxu0
        %v719 = vsel %vm525, %v567, -inf
        %720 = vmax.xlane.f32.xlu0 %v719
        %v721 = vpop.xlane.xlu0 %720
        %v722 = vsel %vm525, %v616, -inf
        %723 = vmax.xlane.f32.xlu0 %v722
        %v724 = vpop.xlane.xlu0 %723
        %v725 = vsel %vm525, %v665, -inf
        %726 = vmax.xlane.f32.xlu0 %v725
        %v727 = vpop.xlane.xlu0 %726
        %v728 = vsel %vm525, %v714, -inf
        %729 = vmax.xlane.f32.xlu0 %v728
        %v730 = vpop.xlane.xlu0 %729
        %v731 = vsub.f32 %v567, %v721
        %v732 = vsub.f32 %v616, %v724
        %v733 = vsub.f32 %v665, %v727
        %v734 = vsub.f32 %v714, %v730
        %v735 = vmul.f32 %v731, 1.442695
        %v736 = vpow.pop %v735
        %v737 = vmul.f32 %v732, 1.442695
        %v738 = vpow.pop %v737
        %v739 = vmul.f32 %v733, 1.442695
        %v740 = vpow.pop %v739
        %v741 = vmul.f32 %v734, 1.442695
        %v742 = vpow.pop %v741
        %v743 = vsel %vm525, %v736, 0.0
        %744 = vadd.xlane.f32.xlu0 %v743
        %v745 = vpop.xlane.xlu0 %744
        %v746 = vsel %vm525, %v738, 0.0
        %747 = vadd.xlane.f32.xlu0 %v746
        %v748 = vpop.xlane.xlu0 %747
        %v749 = vsel %vm525, %v740, 0.0
        %750 = vadd.xlane.f32.xlu0 %v749
        %v751 = vpop.xlane.xlu0 %750
        %v752 = vsel %vm525, %v742, 0.0
        %753 = vadd.xlane.f32.xlu0 %v752
        %v754 = vpop.xlane.xlu0 %753
        %v755 = vrcp.pop %v745
        %v756 = vrcp.pop %v748
        %v757 = vrcp.pop %v751
        %v758 = vrcp.pop %v754
        %v759 = vmul.f32 %v736, %v755
        %v760 = vmul.f32 %v738, %v756
        %v761 = vmul.f32 %v740, %v757
        %v762 = vmul.f32 %v742, %v758
        %v763 = vpack.c.bf16 %v759, %v759
        %v764 = vpack.c.bf16 %v760, %v760
        %v765 = vpack.c.bf16 %v761, %v761
        %v766 = vpack.c.bf16 %v762, %v762
        %767 = vrot.lane.b32.xlu0 %v518, 64
        %v768 = vpop.permute.xlu0 %767
        %v770 = vsel %vm525, %v763, 0
        %vm772 = vcmask 1043456
        %v774 = vsel %vm772, %v768, 0
        %776 = vmatprep.subr.bf16.mxu0 0
        %777 = vmatpush1.bf16.msra.mxu0 %v774
        %778 = vmatprep.subr.bf16.mxu0 0
        %779 = vmatpush1.bf16.msra.mxu0 0
        %780 = vmatprep.subr.bf16.mxu0 0
        %781 = vmatpush1.bf16.msra.mxu0 0
        %782 = vmatprep.subr.bf16.mxu0 0
        %783 = vmatpush1.bf16.msra.mxu0 0
        %784 = vmatprep.subr.bf16.mxu0 0
        %785 = vmatpush1.bf16.msra.mxu0 0
        %786 = vmatprep.subr.bf16.mxu0 0
        %787 = vmatpush1.bf16.msra.mxu0 0
        %788 = vmatprep.subr.bf16.mxu0 0
        %789 = vmatpush1.bf16.msra.mxu0 0
        %790 = vmatprep.subr.bf16.mxu0 0
        %791 = vmatpush1.bf16.msra.mxu0 0
        %792 = vmatprep.subr.bf16.mxu0 0
        %793 = vmatpush1.bf16.msra.mxu0 0
        %794 = vmatprep.subr.bf16.mxu0 0
        %795 = vmatpush1.bf16.msra.mxu0 0
        %796 = vmatprep.subr.bf16.mxu0 0
        %797 = vmatpush1.bf16.msra.mxu0 0
        %798 = vmatprep.subr.bf16.mxu0 0
        %799 = vmatpush1.bf16.msra.mxu0 0
        %800 = vmatprep.subr.bf16.mxu0 0
        %801 = vmatpush1.bf16.msra.mxu0 0
        %802 = vmatprep.subr.bf16.mxu0 0
        %803 = vmatpush1.bf16.msra.mxu0 0
        %804 = vmatprep.subr.bf16.mxu0 0
        %805 = vmatpush1.bf16.msra.mxu0 0
        %806 = vmatprep.subr.bf16.mxu0 0
        %807 = vmatpush1.bf16.msra.mxu0 0
        %808 = vmatprep.mubr.bf16.mxu0 0
        %809 = vmatmul.mubr.bf16.gmra.mrb[0].mxu0 %v770
        %v810 = vpop.f32.mrb[0].mxu0
        %v811 = vadd.f32 0.0, %v810
        %v812 = vpop.f32.mrb[0].mxu0
        %v813 = vpop.f32.mrb[0].mxu0
        %v814 = vpop.f32.mrb[0].mxu0
        %815 = vdwg.mxu0
        %816 = vrot.lane.b32.xlu0 %v519, 64
        %v817 = vpop.permute.xlu0 %816
        %v819 = vsel %vm525, %v764, 0
        %v822 = vsel %vm772, %v817, 0
        %824 = vmatprep.subr.bf16.mxu0 0
        %825 = vmatpush1.bf16.msra.mxu0 %v822
        %826 = vmatprep.subr.bf16.mxu0 0
        %827 = vmatpush1.bf16.msra.mxu0 0
        %828 = vmatprep.subr.bf16.mxu0 0
        %829 = vmatpush1.bf16.msra.mxu0 0
        %830 = vmatprep.subr.bf16.mxu0 0
        %831 = vmatpush1.bf16.msra.mxu0 0
        %832 = vmatprep.subr.bf16.mxu0 0
        %833 = vmatpush1.bf16.msra.mxu0 0
        %834 = vmatprep.subr.bf16.mxu0 0
        %835 = vmatpush1.bf16.msra.mxu0 0
        %836 = vmatprep.subr.bf16.mxu0 0
        %837 = vmatpush1.bf16.msra.mxu0 0
        %838 = vmatprep.subr.bf16.mxu0 0
        %839 = vmatpush1.bf16.msra.mxu0 0
        %840 = vmatprep.subr.bf16.mxu0 0
        %841 = vmatpush1.bf16.msra.mxu0 0
        %842 = vmatprep.subr.bf16.mxu0 0
        %843 = vmatpush1.bf16.msra.mxu0 0
        %844 = vmatprep.subr.bf16.mxu0 0
        %845 = vmatpush1.bf16.msra.mxu0 0
        %846 = vmatprep.subr.bf16.mxu0 0
        %847 = vmatpush1.bf16.msra.mxu0 0
        %848 = vmatprep.subr.bf16.mxu0 0
        %849 = vmatpush1.bf16.msra.mxu0 0
        %850 = vmatprep.subr.bf16.mxu0 0
        %851 = vmatpush1.bf16.msra.mxu0 0
        %852 = vmatprep.subr.bf16.mxu0 0
        %853 = vmatpush1.bf16.msra.mxu0 0
        %854 = vmatprep.subr.bf16.mxu0 0
        %855 = vmatpush1.bf16.msra.mxu0 0
        %856 = vmatprep.mubr.bf16.mxu0 0
        %857 = vmatmul.mubr.bf16.gmra.mrb[0].mxu0 %v819
        %v858 = vpop.f32.mrb[0].mxu0
        %v859 = vadd.f32 0.0, %v858
        %v860 = vpop.f32.mrb[0].mxu0
        %v861 = vpop.f32.mrb[0].mxu0
        %v862 = vpop.f32.mrb[0].mxu0
        %863 = vdwg.mxu0
        %864 = vrot.lane.b32.xlu0 %v520, 64
        %v865 = vpop.permute.xlu0 %864
        %v867 = vsel %vm525, %v765, 0
        %v870 = vsel %vm772, %v865, 0
        %872 = vmatprep.subr.bf16.mxu0 0
        %873 = vmatpush1.bf16.msra.mxu0 %v870
        %874 = vmatprep.subr.bf16.mxu0 0
        %875 = vmatpush1.bf16.msra.mxu0 0
        %876 = vmatprep.subr.bf16.mxu0 0
        %877 = vmatpush1.bf16.msra.mxu0 0
        %878 = vmatprep.subr.bf16.mxu0 0
        %879 = vmatpush1.bf16.msra.mxu0 0
        %880 = vmatprep.subr.bf16.mxu0 0
        %881 = vmatpush1.bf16.msra.mxu0 0
        %882 = vmatprep.subr.bf16.mxu0 0
        %883 = vmatpush1.bf16.msra.mxu0 0
        %884 = vmatprep.subr.bf16.mxu0 0
        %885 = vmatpush1.bf16.msra.mxu0 0
        %886 = vmatprep.subr.bf16.mxu0 0
        %887 = vmatpush1.bf16.msra.mxu0 0
        %888 = vmatprep.subr.bf16.mxu0 0
        %889 = vmatpush1.bf16.msra.mxu0 0
        %890 = vmatprep.subr.bf16.mxu0 0
        %891 = vmatpush1.bf16.msra.mxu0 0
        %892 = vmatprep.subr.bf16.mxu0 0
        %893 = vmatpush1.bf16.msra.mxu0 0
        %894 = vmatprep.subr.bf16.mxu0 0
        %895 = vmatpush1.bf16.msra.mxu0 0
        %896 = vmatprep.subr.bf16.mxu0 0
        %897 = vmatpush1.bf16.msra.mxu0 0
        %898 = vmatprep.subr.bf16.mxu0 0
        %899 = vmatpush1.bf16.msra.mxu0 0
        %900 = vmatprep.subr.bf16.mxu0 0
        %901 = vmatpush1.bf16.msra.mxu0 0
        %902 = vmatprep.subr.bf16.mxu0 0
        %903 = vmatpush1.bf16.msra.mxu0 0
        %904 = vmatprep.mubr.bf16.mxu0 0
        %905 = vmatmul.mubr.bf16.gmra.mrb[0].mxu0 %v867
        %v906 = vpop.f32.mrb[0].mxu0
        %v907 = vadd.f32 0.0, %v906
        %v908 = vpop.f32.mrb[0].mxu0
        %v909 = vpop.f32.mrb[0].mxu0
        %v910 = vpop.f32.mrb[0].mxu0
        %911 = vdwg.mxu0
        %912 = vrot.lane.b32.xlu0 %v521, 64
        %v913 = vpop.permute.xlu0 %912
        %v915 = vsel %vm525, %v766, 0
        %v918 = vsel %vm772, %v913, 0
        %920 = vmatprep.subr.bf16.mxu0 0
        %921 = vmatpush1.bf16.msra.mxu0 %v918
        %922 = vmatprep.subr.bf16.mxu0 0
        %923 = vmatpush1.bf16.msra.mxu0 0
        %924 = vmatprep.subr.bf16.mxu0 0
        %925 = vmatpush1.bf16.msra.mxu0 0
        %926 = vmatprep.subr.bf16.mxu0 0
        %927 = vmatpush1.bf16.msra.mxu0 0
        %928 = vmatprep.subr.bf16.mxu0 0
        %929 = vmatpush1.bf16.msra.mxu0 0
        %930 = vmatprep.subr.bf16.mxu0 0
        %931 = vmatpush1.bf16.msra.mxu0 0
        %932 = vmatprep.subr.bf16.mxu0 0
        %933 = vmatpush1.bf16.msra.mxu0 0
        %934 = vmatprep.subr.bf16.mxu0 0
        %935 = vmatpush1.bf16.msra.mxu0 0
        %936 = vmatprep.subr.bf16.mxu0 0
        %937 = vmatpush1.bf16.msra.mxu0 0
        %938 = vmatprep.subr.bf16.mxu0 0
        %939 = vmatpush1.bf16.msra.mxu0 0
        %940 = vmatprep.subr.bf16.mxu0 0
        %941 = vmatpush1.bf16.msra.mxu0 0
        %942 = vmatprep.subr.bf16.mxu0 0
        %943 = vmatpush1.bf16.msra.mxu0 0
        %944 = vmatprep.subr.bf16.mxu0 0
        %945 = vmatpush1.bf16.msra.mxu0 0
        %946 = vmatprep.subr.bf16.mxu0 0
        %947 = vmatpush1.bf16.msra.mxu0 0
        %948 = vmatprep.subr.bf16.mxu0 0
        %949 = vmatpush1.bf16.msra.mxu0 0
        %950 = vmatprep.subr.bf16.mxu0 0
        %951 = vmatpush1.bf16.msra.mxu0 0
        %952 = vmatprep.mubr.bf16.mxu0 0
        %953 = vmatmul.mubr.bf16.gmra.mrb[0].mxu0 %v915
        %v954 = vpop.f32.mrb[0].mxu0
        %v955 = vadd.f32 0.0, %v954
        %v956 = vpop.f32.mrb[0].mxu0
        %v957 = vpop.f32.mrb[0].mxu0
        %v958 = vpop.f32.mrb[0].mxu0
        %959 = vdwg.mxu0
        %961 = vrot.lane.b32.xlu0 %v859, 8
        %v962 = vpop.permute.xlu0 %961
        %965 = vrot.lane.b32.xlu0 %v907, 16
        %v966 = vpop.permute.xlu0 %965
        %969 = vrot.lane.b32.xlu0 %v955, 24
        %v970 = vpop.permute.xlu0 %969
        %v972 = vsel %vm525, %v811, %v962
        %vm973 = vcmask 130048
        %v974 = vsel %vm973, %v972, %v966
        %vm975 = vcmask 195584
        %v976 = vsel %vm975, %v974, %v970
        %v977 = vpack.c.bf16 %v976, %v976
        %v979 = vlaneseq
        %v980 = vshrl.u32 %v979, 7
        %v981 = vsub.s32 0, %v980
        %v982 = vrot.slane %v505, %v981
        %v988 = vunpack.c.l.b16 %v501
        %v989 = vunpack.c.l.b16 %v502
        %v990 = vunpack.c.l.b16 %v503
        %v991 = vunpack.c.l.b16 %v504
        %v992 = vpack.c.b16 %v989, %v988
        %v993 = vpack.c.b16 %v991, %v990
        %v997 = vsel %vm457, %v977, 0
        %999 = vmatprep.subr.bf16.mxu0 0
        %1000 = vmatpush1.bf16.msra.mxu0 %v992
        %1001 = vmatprep.subr.bf16.mxu0 0
        %1002 = vmatpush1.bf16.msra.mxu0 %v993
        %1003 = vmatprep.subr.bf16.mxu0 0
        %1004 = vmatpush1.bf16.msra.mxu0 0
        %1005 = vmatprep.subr.bf16.mxu0 0
        %1006 = vmatpush1.bf16.msra.mxu0 0
        %1007 = vmatprep.subr.bf16.mxu0 0
        %1008 = vmatpush1.bf16.msra.mxu0 0
        %1009 = vmatprep.subr.bf16.mxu0 0
        %1010 = vmatpush1.bf16.msra.mxu0 0
        %1011 = vmatprep.subr.bf16.mxu0 0
        %1012 = vmatpush1.bf16.msra.mxu0 0
        %1013 = vmatprep.subr.bf16.mxu0 0
        %1014 = vmatpush1.bf16.msra.mxu0 0
        %1015 = vmatprep.subr.bf16.mxu0 0
        %1016 = vmatpush1.bf16.msra.mxu0 0
        %1017 = vmatprep.subr.bf16.mxu0 0
        %1018 = vmatpush1.bf16.msra.mxu0 0
        %1019 = vmatprep.subr.bf16.mxu0 0
        %1020 = vmatpush1.bf16.msra.mxu0 0
        %1021 = vmatprep.subr.bf16.mxu0 0
        %1022 = vmatpush1.bf16.msra.mxu0 0
        %1023 = vmatprep.subr.bf16.mxu0 0
        %1024 = vmatpush1.bf16.msra.mxu0 0
        %1025 = vmatprep.subr.bf16.mxu0 0
        %1026 = vmatpush1.bf16.msra.mxu0 0
        %1027 = vmatprep.subr.bf16.mxu0 0
        %1028 = vmatpush1.bf16.msra.mxu0 0
        %1029 = vmatprep.subr.bf16.mxu0 0
        %1030 = vmatpush1.bf16.msra.mxu0 0
        %1031 = vmatprep.mubr.bf16.mxu0 0
        %1032 = vmatmul.mubr.bf16.gmra.mrb[0].mxu0 %v997
        %v1033 = vpop.f32.mrb[0].mxu0
        %v1034 = vadd.f32 %v982, %v1033
        %v1035 = vpop.f32.mrb[0].mxu0
        %v1036 = vpop.f32.mrb[0].mxu0
        %v1037 = vpop.f32.mrb[0].mxu0
        %1038 = vdwg.mxu0
        %v1039 = vadd.f32 %v418, %v1034
        %v1040 = vsel %vm457, %v1039, 0.0
        %1041 = vadd.xlane.f32.xlu0 %v1040
        %v1042 = vpop.xlane.xlu0 %1041
        %v1043 = vrcp.pop 32.0
        %v1044 = vmul.f32 %v1042, %v1043
        %v1045 = vsub.f32 %v1039, %v1044
        %v1046 = vmul.f32 %v1045, %v1045
        %v1047 = vsel %vm457, %v1046, 0.0
        %1048 = vadd.xlane.f32.xlu0 %v1047
        %v1049 = vpop.xlane.xlu0 %1048
        %v1050 = vmul.f32 %v1049, %v1043
        %v1051 = vadd.f32 %v1050, 1e-05
        %v1052 = vrsqrt.pop %v1051
        %v1053 = vmul.f32 %v1045, %v1052
        %v1055 = vlaneseq
        %v1056 = vshrl.u32 %v1055, 7
        %v1057 = vsub.s32 0, %v1056
        %v1058 = vrot.slane %v506, %v1057
        %v1060 = vmul.f32 %v1053, %v1058
        %v1062 = vlaneseq
        %v1063 = vshrl.u32 %v1062, 7
        %v1064 = vsub.s32 0, %v1063
        %v1065 = vrot.slane %v507, %v1064
        %v1067 = vadd.f32 %v1060, %v1065
        %v1068 = vmul.f32 %v1067, %v425
        %v1069 = vpack.c.bf16 %v1068, %v1068
        %v1070 = vld [vmem:[#allocation8 + $0x8] sm:$0xf]
        %v1071 = vld [vmem:[#allocation8 + $0x24] sm:$0xf]
        %v1072 = vld [vmem:[#allocation8 + $0x40] sm:$0xf]
        %v1073 = vld [vmem:[#allocation8 + $0x5c] sm:$0xf]
        %v1074 = vld [vmem:[%s6 + $0x4] sm:$0x1]
        %v1076 = vlaneseq
        %v1077 = vshrl.u32 %v1076, 7
        %v1078 = vsub.s32 0, %v1077
        %v1079 = vrot.slane %v1074, %v1078
        %v1085 = vunpack.c.l.b16 %v1070
        %v1086 = vunpack.c.l.b16 %v1071
        %v1087 = vunpack.c.l.b16 %v1072
        %v1088 = vunpack.c.l.b16 %v1073
        %v1089 = vpack.c.b16 %v1086, %v1085
        %v1090 = vpack.c.b16 %v1088, %v1087
        %v1094 = vsel %vm457, %v1069, 0
        %1096 = vmatprep.subr.bf16.mxu0 0
        %1097 = vmatpush1.bf16.msra.mxu0 %v1089
        %1098 = vmatprep.subr.bf16.mxu0 0
        %1099 = vmatpush1.bf16.msra.mxu0 %v1090
        %1100 = vmatprep.subr.bf16.mxu0 0
        %1101 = vmatpush1.bf16.msra.mxu0 0
        %1102 = vmatprep.subr.bf16.mxu0 0
        %1103 = vmatpush1.bf16.msra.mxu0 0
        %1104 = vmatprep.subr.bf16.mxu0 0
        %1105 = vmatpush1.bf16.msra.mxu0 0
        %1106 = vmatprep.subr.bf16.mxu0 0
        %1107 = vmatpush1.bf16.msra.mxu0 0
        %1108 = vmatprep.subr.bf16.mxu0 0
        %1109 = vmatpush1.bf16.msra.mxu0 0
        %1110 = vmatprep.subr.bf16.mxu0 0
        %1111 = vmatpush1.bf16.msra.mxu0 0
        %1112 = vmatprep.subr.bf16.mxu0 0
        %1113 = vmatpush1.bf16.msra.mxu0 0
        %1114 = vmatprep.subr.bf16.mxu0 0
        %1115 = vmatpush1.bf16.msra.mxu0 0
        %1116 = vmatprep.subr.bf16.mxu0 0
        %1117 = vmatpush1.bf16.msra.mxu0 0
        %1118 = vmatprep.subr.bf16.mxu0 0
        %1119 = vmatpush1.bf16.msra.mxu0 0
        %1120 = vmatprep.subr.bf16.mxu0 0
        %1121 = vmatpush1.bf16.msra.mxu0 0
        %1122 = vmatprep.subr.bf16.mxu0 0
        %1123 = vmatpush1.bf16.msra.mxu0 0
        %1124 = vmatprep.subr.bf16.mxu0 0
        %1125 = vmatpush1.bf16.msra.mxu0 0
        %1126 = vmatprep.subr.bf16.mxu0 0
        %1127 = vmatpush1.bf16.msra.mxu0 0
        %1128 = vmatprep.mubr.bf16.mxu0 0
        %1129 = vmatmul.mubr.bf16.gmra.mrb[0].mxu0 %v1094
        %v1130 = vpop.f32.mrb[0].mxu0
        %v1131 = vadd.f32 %v1079, %v1130
        %v1132 = vpop.f32.mrb[0].mxu0
        %v1133 = vpop.f32.mrb[0].mxu0
        %v1134 = vpop.f32.mrb[0].mxu0
        %1135 = vdwg.mxu0
        %v1136 = vpack.c.bf16 %v420, %v419
        %v1137 = vld [vmem:[#allocation8 + $0xc] sm:$0xf]
        %v1138 = vld [vmem:[#allocation8 + $0x28] sm:$0xf]
        %v1139 = vld [vmem:[#allocation8 + $0x44] sm:$0xf]
        %v1140 = vld [vmem:[#allocation8 + $0x60] sm:$0xf]
        %v1141 = vld [vmem:[%s6 + $0x5] sm:$0x1]
        %v1143 = vlaneseq
        %v1144 = vshrl.u32 %v1143, 7
        %v1145 = vsub.s32 0, %v1144
        %v1146 = vrot.slane %v1141, %v1145
        %v1152 = vunpack.c.l.b16 %v1137
        %v1153 = vunpack.c.l.b16 %v1138
        %v1154 = vunpack.c.l.b16 %v1139
        %v1155 = vunpack.c.l.b16 %v1140
        %v1156 = vpack.c.b16 %v1153, %v1152
        %v1157 = vpack.c.b16 %v1155, %v1154
        %v1161 = vsel %vm457, %v1136, 0
        %1163 = vmatprep.subr.bf16.mxu0 0
        %1164 = vmatpush1.bf16.msra.mxu0 %v1156
        %1165 = vmatprep.subr.bf16.mxu0 0
        %1166 = vmatpush1.bf16.msra.mxu0 %v1157
        %1167 = vmatprep.subr.bf16.mxu0 0
        %1168 = vmatpush1.bf16.msra.mxu0 0
        %1169 = vmatprep.subr.bf16.mxu0 0
        %1170 = vmatpush1.bf16.msra.mxu0 0
        %1171 = vmatprep.subr.bf16.mxu0 0
        %1172 = vmatpush1.bf16.msra.mxu0 0
        %1173 = vmatprep.subr.bf16.mxu0 0
        %1174 = vmatpush1.bf16.msra.mxu0 0
        %1175 = vmatprep.subr.bf16.mxu0 0
        %1176 = vmatpush1.bf16.msra.mxu0 0
        %1177 = vmatprep.subr.bf16.mxu0 0
        %1178 = vmatpush1.bf16.msra.mxu0 0
        %1179 = vmatprep.subr.bf16.mxu0 0
        %1180 = vmatpush1.bf16.msra.mxu0 0
        %1181 = vmatprep.subr.bf16.mxu0 0
        %1182 = vmatpush1.bf16.msra.mxu0 0
        %1183 = vmatprep.subr.bf16.mxu0 0
        %1184 = vmatpush1.bf16.msra.mxu0 0
        %1185 = vmatprep.subr.bf16.mxu0 0
        %1186 = vmatpush1.bf16.msra.mxu0 0
        %1187 = vmatprep.subr.bf16.mxu0 0
        %1188 = vmatpush1.bf16.msra.mxu0 0
        %1189 = vmatprep.subr.bf16.mxu0 0
        %1190 = vmatpush1.bf16.msra.mxu0 0
        %1191 = vmatprep.subr.bf16.mxu0 0
        %1192 = vmatpush1.bf16.msra.mxu0 0
        %1193 = vmatprep.subr.bf16.mxu0 0
        %1194 = vmatpush1.bf16.msra.mxu0 0
        %1195 = vmatprep.mubr.bf16.mxu0 0
        %1196 = vmatmul.mubr.bf16.gmra.mrb[0].mxu0 %v1161
        %v1197 = vpop.f32.mrb[0].mxu0
        %v1198 = vadd.f32 %v1146, %v1197
        %v1199 = vpop.f32.mrb[0].mxu0
        %v1200 = vpop.f32.mrb[0].mxu0
        %v1201 = vadd.f32 %v1146, %v1200
        %v1202 = vpop.f32.mrb[0].mxu0
        %1203 = vdwg.mxu0
        %v1204 = vld [vmem:[#allocation8 + $0x10] sm:$0xf]
        %v1205 = vld [vmem:[#allocation8 + $0x2c] sm:$0xf]
        %v1206 = vld [vmem:[#allocation8 + $0x48] sm:$0xf]
        %v1207 = vld [vmem:[#allocation8 + $0x64] sm:$0xf]
        %v1208 = vld [vmem:[%s6 + $0x6] sm:$0x1]
        %v1209 = vld [vmem:[%s6 + $0x7] sm:$0x1]
        %v1210 = vld [vmem:[%s6 + $0x8] sm:$0x1]
        %1212 = vrot.lane.b32.xlu0 %v1131, 120
        %v1213 = vpop.permute.xlu0 %1212
        %1215 = vrot.lane.b32.xlu0 %v1131, 112
        %v1216 = vpop.permute.xlu0 %1215
        %1218 = vrot.lane.b32.xlu0 %v1131, 104
        %v1219 = vpop.permute.xlu0 %1218
        %v1221 = vpack.c.bf16 %v1131, %v1131
        %v1222 = vpack.c.bf16 %v1213, %v1213
        %v1223 = vpack.c.bf16 %v1216, %v1216
        %v1224 = vpack.c.bf16 %v1219, %v1219
        %1227 = vrot.lane.b32.xlu0 %v1198, 120
        %v1228 = vpop.permute.xlu0 %1227
        %1229 = vrot.lane.b32.xlu0 %v1201, 120
        %v1230 = vpop.permute.xlu0 %1229
        %1233 = vrot.lane.b32.xlu0 %v1198, 112
        %v1234 = vpop.permute.xlu0 %1233
        %1235 = vrot.lane.b32.xlu0 %v1201, 112
        %v1236 = vpop.permute.xlu0 %1235
        %1239 = vrot.lane.b32.xlu0 %v1198, 104
        %v1240 = vpop.permute.xlu0 %1239
        %1241 = vrot.lane.b32.xlu0 %v1201, 104
        %v1242 = vpop.permute.xlu0 %1241
        %v1245 = vpack.c.bf16 %v1201, %v1198
        %v1246 = vpack.c.bf16 %v1230, %v1228
        %v1247 = vpack.c.bf16 %v1236, %v1234
        %v1248 = vpack.c.bf16 %v1242, %v1240
        %v1250 = vsel %vm525, %v1221, 0
        %v1253 = vsel %vm525, %v1245, 0
        %1255 = vmatprep.subr.bf16.mxu0 0
        %1256 = vmatpush1.bf16.xpose.msra.mxu0 %v1253
        %1257 = vmatprep.subr.bf16.mxu0 0
        %1258 = vmatpush1.bf16.xpose.msra.mxu0 0
        %1259 = vmatprep.subr.bf16.mxu0 0
        %1260 = vmatpush1.bf16.xpose.msra.mxu0 0
        %1261 = vmatprep.subr.bf16.mxu0 0
        %1262 = vmatpush1.bf16.xpose.msra.mxu0 0
        %1263 = vmatprep.subr.bf16.mxu0 0
        %1264 = vmatpush1.bf16.xpose.msra.mxu0 0
        %1265 = vmatprep.subr.bf16.mxu0 0
        %1266 = vmatpush1.bf16.xpose.msra.mxu0 0
        %1267 = vmatprep.subr.bf16.mxu0 0
        %1268 = vmatpush1.bf16.xpose.msra.mxu0 0
        %1269 = vmatprep.subr.bf16.mxu0 0
        %1270 = vmatpush1.bf16.xpose.msra.mxu0 0
        %1271 = vmatprep.subr.bf16.mxu0 0
        %1272 = vmatpush1.bf16.xpose.msra.mxu0 0
        %1273 = vmatprep.subr.bf16.mxu0 0
        %1274 = vmatpush1.bf16.xpose.msra.mxu0 0
        %1275 = vmatprep.subr.bf16.mxu0 0
        %1276 = vmatpush1.bf16.xpose.msra.mxu0 0
        %1277 = vmatprep.subr.bf16.mxu0 0
        %1278 = vmatpush1.bf16.xpose.msra.mxu0 0
        %1279 = vmatprep.subr.bf16.mxu0 0
        %1280 = vmatpush1.bf16.xpose.msra.mxu0 0
        %1281 = vmatprep.subr.bf16.mxu0 0
        %1282 = vmatpush1.bf16.xpose.msra.mxu0 0
        %1283 = vmatprep.subr.bf16.mxu0 0
        %1284 = vmatpush1.bf16.xpose.msra.mxu0 0
        %1285 = vmatprep.subr.bf16.mxu0 0
        %1286 = vmatpush1.bf16.xpose.msra.mxu0 0
        %1287 = vmatprep.mubr.bf16.mxu0 0
        %1288 = vmatmul.mubr.bf16.gmra.mrb[0].mxu0 %v1250
        %v1289 = vpop.f32.mrb[0].mxu0
        %v1290 = vadd.f32 %v432, %v1289
        %v1291 = vpop.f32.mrb[0].mxu0
        %v1292 = vpop.f32.mrb[0].mxu0
        %v1293 = vpop.f32.mrb[0].mxu0
        %1294 = vdwg.mxu0
        %v1296 = vsel %vm525, %v1222, 0
        %v1299 = vsel %vm525, %v1246, 0
        %1301 = vmatprep.subr.bf16.mxu0 0
        %1302 = vmatpush1.bf16.xpose.msra.mxu0 %v1299
        %1303 = vmatprep.subr.bf16.mxu0 0
        %1304 = vmatpush1.bf16.xpose.msra.mxu0 0
        %1305 = vmatprep.subr.bf16.mxu0 0
        %1306 = vmatpush1.bf16.xpose.msra.mxu0 0
        %1307 = vmatprep.subr.bf16.mxu0 0
        %1308 = vmatpush1.bf16.xpose.msra.mxu0 0
        %1309 = vmatprep.subr.bf16.mxu0 0
        %1310 = vmatpush1.bf16.xpose.msra.mxu0 0
        %1311 = vmatprep.subr.bf16.mxu0 0
        %1312 = vmatpush1.bf16.xpose.msra.mxu0 0
        %1313 = vmatprep.subr.bf16.mxu0 0
        %1314 = vmatpush1.bf16.xpose.msra.mxu0 0
        %1315 = vmatprep.subr.bf16.mxu0 0
        %1316 = vmatpush1.bf16.xpose.msra.mxu0 0
        %1317 = vmatprep.subr.bf16.mxu0 0
        %1318 = vmatpush1.bf16.xpose.msra.mxu0 0
        %1319 = vmatprep.subr.bf16.mxu0 0
        %1320 = vmatpush1.bf16.xpose.msra.mxu0 0
        %1321 = vmatprep.subr.bf16.mxu0 0
        %1322 = vmatpush1.bf16.xpose.msra.mxu0 0
        %1323 = vmatprep.subr.bf16.mxu0 0
        %1324 = vmatpush1.bf16.xpose.msra.mxu0 0
        %1325 = vmatprep.subr.bf16.mxu0 0
        %1326 = vmatpush1.bf16.xpose.msra.mxu0 0
        %1327 = vmatprep.subr.bf16.mxu0 0
        %1328 = vmatpush1.bf16.xpose.msra.mxu0 0
        %1329 = vmatprep.subr.bf16.mxu0 0
        %1330 = vmatpush1.bf16.xpose.msra.mxu0 0
        %1331 = vmatprep.subr.bf16.mxu0 0
        %1332 = vmatpush1.bf16.xpose.msra.mxu0 0
        %1333 = vmatprep.mubr.bf16.mxu0 0
        %1334 = vmatmul.mubr.bf16.gmra.mrb[0].mxu0 %v1296
        %v1335 = vpop.f32.mrb[0].mxu0
        %v1336 = vadd.f32 %v432, %v1335
        %v1337 = vpop.f32.mrb[0].mxu0
        %v1338 = vpop.f32.mrb[0].mxu0
        %v1339 = vpop.f32.mrb[0].mxu0
        %1340 = vdwg.mxu0
        %v1342 = vsel %vm525, %v1223, 0
        %v1345 = vsel %vm525, %v1247, 0
        %1347 = vmatprep.subr.bf16.mxu0 0
        %1348 = vmatpush1.bf16.xpose.msra.mxu0 %v1345
        %1349 = vmatprep.subr.bf16.mxu0 0
        %1350 = vmatpush1.bf16.xpose.msra.mxu0 0
        %1351 = vmatprep.subr.bf16.mxu0 0
        %1352 = vmatpush1.bf16.xpose.msra.mxu0 0
        %1353 = vmatprep.subr.bf16.mxu0 0
        %1354 = vmatpush1.bf16.xpose.msra.mxu0 0
        %1355 = vmatprep.subr.bf16.mxu0 0
        %1356 = vmatpush1.bf16.xpose.msra.mxu0 0
        %1357 = vmatprep.subr.bf16.mxu0 0
        %1358 = vmatpush1.bf16.xpose.msra.mxu0 0
        %1359 = vmatprep.subr.bf16.mxu0 0
        %1360 = vmatpush1.bf16.xpose.msra.mxu0 0
        %1361 = vmatprep.subr.bf16.mxu0 0
        %1362 = vmatpush1.bf16.xpose.msra.mxu0 0
        %1363 = vmatprep.subr.bf16.mxu0 0
        %1364 = vmatpush1.bf16.xpose.msra.mxu0 0
        %1365 = vmatprep.subr.bf16.mxu0 0
        %1366 = vmatpush1.bf16.xpose.msra.mxu0 0
        %1367 = vmatprep.subr.bf16.mxu0 0
        %1368 = vmatpush1.bf16.xpose.msra.mxu0 0
        %1369 = vmatprep.subr.bf16.mxu0 0
        %1370 = vmatpush1.bf16.xpose.msra.mxu0 0
        %1371 = vmatprep.subr.bf16.mxu0 0
        %1372 = vmatpush1.bf16.xpose.msra.mxu0 0
        %1373 = vmatprep.subr.bf16.mxu0 0
        %1374 = vmatpush1.bf16.xpose.msra.mxu0 0
        %1375 = vmatprep.subr.bf16.mxu0 0
        %1376 = vmatpush1.bf16.xpose.msra.mxu0 0
        %1377 = vmatprep.subr.bf16.mxu0 0
        %1378 = vmatpush1.bf16.xpose.msra.mxu0 0
        %1379 = vmatprep.mubr.bf16.mxu0 0
        %1380 = vmatmul.mubr.bf16.gmra.mrb[0].mxu0 %v1342
        %v1381 = vpop.f32.mrb[0].mxu0
        %v1382 = vadd.f32 %v432, %v1381
        %v1383 = vpop.f32.mrb[0].mxu0
        %v1384 = vpop.f32.mrb[0].mxu0
        %v1385 = vpop.f32.mrb[0].mxu0
        %1386 = vdwg.mxu0
        %v1388 = vsel %vm525, %v1224, 0
        %v1391 = vsel %vm525, %v1248, 0
        %1393 = vmatprep.subr.bf16.mxu0 0
        %1394 = vmatpush1.bf16.xpose.msra.mxu0 %v1391
        %1395 = vmatprep.subr.bf16.mxu0 0
        %1396 = vmatpush1.bf16.xpose.msra.mxu0 0
        %1397 = vmatprep.subr.bf16.mxu0 0
        %1398 = vmatpush1.bf16.xpose.msra.mxu0 0
        %1399 = vmatprep.subr.bf16.mxu0 0
        %1400 = vmatpush1.bf16.xpose.msra.mxu0 0
        %1401 = vmatprep.subr.bf16.mxu0 0
        %1402 = vmatpush1.bf16.xpose.msra.mxu0 0
        %1403 = vmatprep.subr.bf16.mxu0 0
        %1404 = vmatpush1.bf16.xpose.msra.mxu0 0
        %1405 = vmatprep.subr.bf16.mxu0 0
        %1406 = vmatpush1.bf16.xpose.msra.mxu0 0
        %1407 = vmatprep.subr.bf16.mxu0 0
        %1408 = vmatpush1.bf16.xpose.msra.mxu0 0
        %1409 = vmatprep.subr.bf16.mxu0 0
        %1410 = vmatpush1.bf16.xpose.msra.mxu0 0
        %1411 = vmatprep.subr.bf16.mxu0 0
        %1412 = vmatpush1.bf16.xpose.msra.mxu0 0
        %1413 = vmatprep.subr.bf16.mxu0 0
        %1414 = vmatpush1.bf16.xpose.msra.mxu0 0
        %1415 = vmatprep.subr.bf16.mxu0 0
        %1416 = vmatpush1.bf16.xpose.msra.mxu0 0
        %1417 = vmatprep.subr.bf16.mxu0 0
        %1418 = vmatpush1.bf16.xpose.msra.mxu0 0
        %1419 = vmatprep.subr.bf16.mxu0 0
        %1420 = vmatpush1.bf16.xpose.msra.mxu0 0
        %1421 = vmatprep.subr.bf16.mxu0 0
        %1422 = vmatpush1.bf16.xpose.msra.mxu0 0
        %1423 = vmatprep.subr.bf16.mxu0 0
        %1424 = vmatpush1.bf16.xpose.msra.mxu0 0
        %1425 = vmatprep.mubr.bf16.mxu0 0
        %1426 = vmatmul.mubr.bf16.gmra.mrb[0].mxu0 %v1388
        %v1427 = vpop.f32.mrb[0].mxu0
        %v1428 = vadd.f32 %v432, %v1427
        %v1429 = vpop.f32.mrb[0].mxu0
        %v1430 = vpop.f32.mrb[0].mxu0
        %v1431 = vpop.f32.mrb[0].mxu0
        %1432 = vdwg.mxu0
        %v1433 = vsel %vm973, %v1290, -inf
        %1434 = vmax.xlane.f32.xlu0 %v1433
        %v1435 = vpop.xlane.xlu0 %1434
        %v1436 = vsel %vm973, %v1336, -inf
        %1437 = vmax.xlane.f32.xlu0 %v1436
        %v1438 = vpop.xlane.xlu0 %1437
        %v1439 = vsel %vm973, %v1382, -inf
        %1440 = vmax.xlane.f32.xlu0 %v1439
        %v1441 = vpop.xlane.xlu0 %1440
        %v1442 = vsel %vm973, %v1428, -inf
        %1443 = vmax.xlane.f32.xlu0 %v1442
        %v1444 = vpop.xlane.xlu0 %1443
        %v1445 = vsub.f32 %v1290, %v1435
        %v1446 = vsub.f32 %v1336, %v1438
        %v1447 = vsub.f32 %v1382, %v1441
        %v1448 = vsub.f32 %v1428, %v1444
        %v1449 = vmul.f32 %v1445, 1.442695
        %v1450 = vpow.pop %v1449
        %v1451 = vmul.f32 %v1446, 1.442695
        %v1452 = vpow.pop %v1451
        %v1453 = vmul.f32 %v1447, 1.442695
        %v1454 = vpow.pop %v1453
        %v1455 = vmul.f32 %v1448, 1.442695
        %v1456 = vpow.pop %v1455
        %v1457 = vsel %vm973, %v1450, 0.0
        %1458 = vadd.xlane.f32.xlu0 %v1457
        %v1459 = vpop.xlane.xlu0 %1458
        %v1460 = vsel %vm973, %v1452, 0.0
        %1461 = vadd.xlane.f32.xlu0 %v1460
        %v1462 = vpop.xlane.xlu0 %1461
        %v1463 = vsel %vm973, %v1454, 0.0
        %1464 = vadd.xlane.f32.xlu0 %v1463
        %v1465 = vpop.xlane.xlu0 %1464
        %v1466 = vsel %vm973, %v1456, 0.0
        %1467 = vadd.xlane.f32.xlu0 %v1466
        %v1468 = vpop.xlane.xlu0 %1467
        %v1469 = vrcp.pop %v1459
        %v1470 = vrcp.pop %v1462
        %v1471 = vrcp.pop %v1465
        %v1472 = vrcp.pop %v1468
        %v1473 = vmul.f32 %v1450, %v1469
        %v1474 = vmul.f32 %v1452, %v1470
        %v1475 = vmul.f32 %v1454, %v1471
        %v1476 = vmul.f32 %v1456, %v1472
        %v1477 = vpack.c.bf16 %v1473, %v1473
        %v1478 = vpack.c.bf16 %v1474, %v1474
        %v1479 = vpack.c.bf16 %v1475, %v1475
        %v1480 = vpack.c.bf16 %v1476, %v1476
        %1482 = vrot.lane.b32.xlu0 %v1245, 96
        %v1483 = vpop.permute.xlu0 %1482
        %v1486 = vsel %vm973, %v1477, 0
        %1488 = vmatprep.subr.bf16.mxu0 0
        %1489 = vmatpush1.bf16.msra.mxu0 %v1483
        %1490 = vmatprep.subr.bf16.mxu0 0
        %1491 = vmatpush1.bf16.msra.mxu0 0
        %1492 = vmatprep.subr.bf16.mxu0 0
        %1493 = vmatpush1.bf16.msra.mxu0 0
        %1494 = vmatprep.subr.bf16.mxu0 0
        %1495 = vmatpush1.bf16.msra.mxu0 0
        %1496 = vmatprep.subr.bf16.mxu0 0
        %1497 = vmatpush1.bf16.msra.mxu0 0
        %1498 = vmatprep.subr.bf16.mxu0 0
        %1499 = vmatpush1.bf16.msra.mxu0 0
        %1500 = vmatprep.subr.bf16.mxu0 0
        %1501 = vmatpush1.bf16.msra.mxu0 0
        %1502 = vmatprep.subr.bf16.mxu0 0
        %1503 = vmatpush1.bf16.msra.mxu0 0
        %1504 = vmatprep.subr.bf16.mxu0 0
        %1505 = vmatpush1.bf16.msra.mxu0 0
        %1506 = vmatprep.subr.bf16.mxu0 0
        %1507 = vmatpush1.bf16.msra.mxu0 0
        %1508 = vmatprep.subr.bf16.mxu0 0
        %1509 = vmatpush1.bf16.msra.mxu0 0
        %1510 = vmatprep.subr.bf16.mxu0 0
        %1511 = vmatpush1.bf16.msra.mxu0 0
        %1512 = vmatprep.subr.bf16.mxu0 0
        %1513 = vmatpush1.bf16.msra.mxu0 0
        %1514 = vmatprep.subr.bf16.mxu0 0
        %1515 = vmatpush1.bf16.msra.mxu0 0
        %1516 = vmatprep.subr.bf16.mxu0 0
        %1517 = vmatpush1.bf16.msra.mxu0 0
        %1518 = vmatprep.subr.bf16.mxu0 0
        %1519 = vmatpush1.bf16.msra.mxu0 0
        %1520 = vmatprep.mubr.bf16.mxu0 0
        %1521 = vmatmul.mubr.bf16.gmra.mrb[0].mxu0 %v1486
        %v1522 = vpop.f32.mrb[0].mxu0
        %v1523 = vadd.f32 0.0, %v1522
        %v1524 = vpop.f32.mrb[0].mxu0
        %v1525 = vpop.f32.mrb[0].mxu0
        %v1526 = vpop.f32.mrb[0].mxu0
        %1527 = vdwg.mxu0
        %1529 = vrot.lane.b32.xlu0 %v1246, 96
        %v1530 = vpop.permute.xlu0 %1529
        %v1533 = vsel %vm973, %v1478, 0
        %1535 = vmatprep.subr.bf16.mxu0 0
        %1536 = vmatpush1.bf16.msra.mxu0 %v1530
        %1537 = vmatprep.subr.bf16.mxu0 0
        %1538 = vmatpush1.bf16.msra.mxu0 0
        %1539 = vmatprep.subr.bf16.mxu0 0
        %1540 = vmatpush1.bf16.msra.mxu0 0
        %1541 = vmatprep.subr.bf16.mxu0 0
        %1542 = vmatpush1.bf16.msra.mxu0 0
        %1543 = vmatprep.subr.bf16.mxu0 0
        %1544 = vmatpush1.bf16.msra.mxu0 0
        %1545 = vmatprep.subr.bf16.mxu0 0
        %1546 = vmatpush1.bf16.msra.mxu0 0
        %1547 = vmatprep.subr.bf16.mxu0 0
        %1548 = vmatpush1.bf16.msra.mxu0 0
        %1549 = vmatprep.subr.bf16.mxu0 0
        %1550 = vmatpush1.bf16.msra.mxu0 0
        %1551 = vmatprep.subr.bf16.mxu0 0
        %1552 = vmatpush1.bf16.msra.mxu0 0
        %1553 = vmatprep.subr.bf16.mxu0 0
        %1554 = vmatpush1.bf16.msra.mxu0 0
        %1555 = vmatprep.subr.bf16.mxu0 0
        %1556 = vmatpush1.bf16.msra.mxu0 0
        %1557 = vmatprep.subr.bf16.mxu0 0
        %1558 = vmatpush1.bf16.msra.mxu0 0
        %1559 = vmatprep.subr.bf16.mxu0 0
        %1560 = vmatpush1.bf16.msra.mxu0 0
        %1561 = vmatprep.subr.bf16.mxu0 0
        %1562 = vmatpush1.bf16.msra.mxu0 0
        %1563 = vmatprep.subr.bf16.mxu0 0
        %1564 = vmatpush1.bf16.msra.mxu0 0
        %1565 = vmatprep.subr.bf16.mxu0 0
        %1566 = vmatpush1.bf16.msra.mxu0 0
        %1567 = vmatprep.mubr.bf16.mxu0 0
        %1568 = vmatmul.mubr.bf16.gmra.mrb[0].mxu0 %v1533
        %v1569 = vpop.f32.mrb[0].mxu0
        %v1570 = vadd.f32 0.0, %v1569
        %v1571 = vpop.f32.mrb[0].mxu0
        %v1572 = vpop.f32.mrb[0].mxu0
        %v1573 = vpop.f32.mrb[0].mxu0
        %1574 = vdwg.mxu0
        %1576 = vrot.lane.b32.xlu0 %v1247, 96
        %v1577 = vpop.permute.xlu0 %1576
        %v1580 = vsel %vm973, %v1479, 0
        %1582 = vmatprep.subr.bf16.mxu0 0
        %1583 = vmatpush1.bf16.msra.mxu0 %v1577
        %1584 = vmatprep.subr.bf16.mxu0 0
        %1585 = vmatpush1.bf16.msra.mxu0 0
        %1586 = vmatprep.subr.bf16.mxu0 0
        %1587 = vmatpush1.bf16.msra.mxu0 0
        %1588 = vmatprep.subr.bf16.mxu0 0
        %1589 = vmatpush1.bf16.msra.mxu0 0
        %1590 = vmatprep.subr.bf16.mxu0 0
        %1591 = vmatpush1.bf16.msra.mxu0 0
        %1592 = vmatprep.subr.bf16.mxu0 0
        %1593 = vmatpush1.bf16.msra.mxu0 0
        %1594 = vmatprep.subr.bf16.mxu0 0
        %1595 = vmatpush1.bf16.msra.mxu0 0
        %1596 = vmatprep.subr.bf16.mxu0 0
        %1597 = vmatpush1.bf16.msra.mxu0 0
        %1598 = vmatprep.subr.bf16.mxu0 0
        %1599 = vmatpush1.bf16.msra.mxu0 0
        %1600 = vmatprep.subr.bf16.mxu0 0
        %1601 = vmatpush1.bf16.msra.mxu0 0
        %1602 = vmatprep.subr.bf16.mxu0 0
        %1603 = vmatpush1.bf16.msra.mxu0 0
        %1604 = vmatprep.subr.bf16.mxu0 0
        %1605 = vmatpush1.bf16.msra.mxu0 0
        %1606 = vmatprep.subr.bf16.mxu0 0
        %1607 = vmatpush1.bf16.msra.mxu0 0
        %1608 = vmatprep.subr.bf16.mxu0 0
        %1609 = vmatpush1.bf16.msra.mxu0 0
        %1610 = vmatprep.subr.bf16.mxu0 0
        %1611 = vmatpush1.bf16.msra.mxu0 0
        %1612 = vmatprep.subr.bf16.mxu0 0
        %1613 = vmatpush1.bf16.msra.mxu0 0
        %1614 = vmatprep.mubr.bf16.mxu0 0
        %1615 = vmatmul.mubr.bf16.gmra.mrb[0].mxu0 %v1580
        %v1616 = vpop.f32.mrb[0].mxu0
        %v1617 = vadd.f32 0.0, %v1616
        %v1618 = vpop.f32.mrb[0].mxu0
        %v1619 = vpop.f32.mrb[0].mxu0
        %v1620 = vpop.f32.mrb[0].mxu0
        %1621 = vdwg.mxu0
        %1623 = vrot.lane.b32.xlu0 %v1248, 96
        %v1624 = vpop.permute.xlu0 %1623
        %v1627 = vsel %vm973, %v1480, 0
        %1629 = vmatprep.subr.bf16.mxu0 0
        %1630 = vmatpush1.bf16.msra.mxu0 %v1624
        %1631 = vmatprep.subr.bf16.mxu0 0
        %1632 = vmatpush1.bf16.msra.mxu0 0
        %1633 = vmatprep.subr.bf16.mxu0 0
        %1634 = vmatpush1.bf16.msra.mxu0 0
        %1635 = vmatprep.subr.bf16.mxu0 0
        %1636 = vmatpush1.bf16.msra.mxu0 0
        %1637 = vmatprep.subr.bf16.mxu0 0
        %1638 = vmatpush1.bf16.msra.mxu0 0
        %1639 = vmatprep.subr.bf16.mxu0 0
        %1640 = vmatpush1.bf16.msra.mxu0 0
        %1641 = vmatprep.subr.bf16.mxu0 0
        %1642 = vmatpush1.bf16.msra.mxu0 0
        %1643 = vmatprep.subr.bf16.mxu0 0
        %1644 = vmatpush1.bf16.msra.mxu0 0
        %1645 = vmatprep.subr.bf16.mxu0 0
        %1646 = vmatpush1.bf16.msra.mxu0 0
        %1647 = vmatprep.subr.bf16.mxu0 0
        %1648 = vmatpush1.bf16.msra.mxu0 0
        %1649 = vmatprep.subr.bf16.mxu0 0
        %1650 = vmatpush1.bf16.msra.mxu0 0
        %1651 = vmatprep.subr.bf16.mxu0 0
        %1652 = vmatpush1.bf16.msra.mxu0 0
        %1653 = vmatprep.subr.bf16.mxu0 0
        %1654 = vmatpush1.bf16.msra.mxu0 0
        %1655 = vmatprep.subr.bf16.mxu0 0
        %1656 = vmatpush1.bf16.msra.mxu0 0
        %1657 = vmatprep.subr.bf16.mxu0 0
        %1658 = vmatpush1.bf16.msra.mxu0 0
        %1659 = vmatprep.subr.bf16.mxu0 0
        %1660 = vmatpush1.bf16.msra.mxu0 0
        %1661 = vmatprep.mubr.bf16.mxu0 0
        %1662 = vmatmul.mubr.bf16.gmra.mrb[0].mxu0 %v1627
        %v1663 = vpop.f32.mrb[0].mxu0
        %v1664 = vadd.f32 0.0, %v1663
        %v1665 = vpop.f32.mrb[0].mxu0
        %v1666 = vpop.f32.mrb[0].mxu0
        %v1667 = vpop.f32.mrb[0].mxu0
        %1668 = vdwg.mxu0
        %1670 = vrot.lane.b32.xlu0 %v1570, 8
        %v1671 = vpop.permute.xlu0 %1670
        %1674 = vrot.lane.b32.xlu0 %v1617, 16
        %v1675 = vpop.permute.xlu0 %1674
        %1678 = vrot.lane.b32.xlu0 %v1664, 24
        %v1679 = vpop.permute.xlu0 %1678
        %v1681 = vsel %vm525, %v1523, %v1671
        %v1682 = vsel %vm973, %v1681, %v1675
        %v1683 = vsel %vm975, %v1682, %v1679
        %v1684 = vpack.c.bf16 %v1683, %v1683
        %v1686 = vlaneseq
        %v1687 = vshrl.u32 %v1686, 7
        %v1688 = vsub.s32 0, %v1687
        %v1689 = vrot.slane %v1208, %v1688
        %v1695 = vunpack.c.l.b16 %v1204
        %v1696 = vunpack.c.l.b16 %v1205
        %v1697 = vunpack.c.l.b16 %v1206
        %v1698 = vunpack.c.l.b16 %v1207
        %v1699 = vpack.c.b16 %v1696, %v1695
        %v1700 = vpack.c.b16 %v1698, %v1697
        %v1704 = vsel %vm457, %v1684, 0
        %1706 = vmatprep.subr.bf16.mxu0 0
        %1707 = vmatpush1.bf16.msra.mxu0 %v1699
        %1708 = vmatprep.subr.bf16.mxu0 0
        %1709 = vmatpush1.bf16.msra.mxu0 %v1700
        %1710 = vmatprep.subr.bf16.mxu0 0
        %1711 = vmatpush1.bf16.msra.mxu0 0
        %1712 = vmatprep.subr.bf16.mxu0 0
        %1713 = vmatpush1.bf16.msra.mxu0 0
        %1714 = vmatprep.subr.bf16.mxu0 0
        %1715 = vmatpush1.bf16.msra.mxu0 0
        %1716 = vmatprep.subr.bf16.mxu0 0
        %1717 = vmatpush1.bf16.msra.mxu0 0
        %1718 = vmatprep.subr.bf16.mxu0 0
        %1719 = vmatpush1.bf16.msra.mxu0 0
        %1720 = vmatprep.subr.bf16.mxu0 0
        %1721 = vmatpush1.bf16.msra.mxu0 0
        %1722 = vmatprep.subr.bf16.mxu0 0
        %1723 = vmatpush1.bf16.msra.mxu0 0
        %1724 = vmatprep.subr.bf16.mxu0 0
        %1725 = vmatpush1.bf16.msra.mxu0 0
        %1726 = vmatprep.subr.bf16.mxu0 0
        %1727 = vmatpush1.bf16.msra.mxu0 0
        %1728 = vmatprep.subr.bf16.mxu0 0
        %1729 = vmatpush1.bf16.msra.mxu0 0
        %1730 = vmatprep.subr.bf16.mxu0 0
        %1731 = vmatpush1.bf16.msra.mxu0 0
        %1732 = vmatprep.subr.bf16.mxu0 0
        %1733 = vmatpush1.bf16.msra.mxu0 0
        %1734 = vmatprep.subr.bf16.mxu0 0
        %1735 = vmatpush1.bf16.msra.mxu0 0
        %1736 = vmatprep.subr.bf16.mxu0 0
        %1737 = vmatpush1.bf16.msra.mxu0 0
        %1738 = vmatprep.mubr.bf16.mxu0 0
        %1739 = vmatmul.mubr.bf16.gmra.mrb[0].mxu0 %v1704
        %v1740 = vpop.f32.mrb[0].mxu0
        %v1741 = vadd.f32 %v1689, %v1740
        %v1742 = vpop.f32.mrb[0].mxu0
        %v1743 = vpop.f32.mrb[0].mxu0
        %v1744 = vpop.f32.mrb[0].mxu0
        %1745 = vdwg.mxu0
        %v1746 = vadd.f32 %v1068, %v1741
        %v1747 = vsel %vm457, %v1746, 0.0
        %1748 = vadd.xlane.f32.xlu0 %v1747
        %v1749 = vpop.xlane.xlu0 %1748
        %v1750 = vmul.f32 %v1749, %v1043
        %v1751 = vsub.f32 %v1746, %v1750
        %v1752 = vmul.f32 %v1751, %v1751
        %v1753 = vsel %vm457, %v1752, 0.0
        %1754 = vadd.xlane.f32.xlu0 %v1753
        %v1755 = vpop.xlane.xlu0 %1754
        %v1756 = vmul.f32 %v1755, %v1043
        %v1757 = vadd.f32 %v1756, 1e-05
        %v1758 = vrsqrt.pop %v1757
        %v1759 = vmul.f32 %v1751, %v1758
        %v1761 = vlaneseq
        %v1762 = vshrl.u32 %v1761, 7
        %v1763 = vsub.s32 0, %v1762
        %v1764 = vrot.slane %v1209, %v1763
        %v1766 = vmul.f32 %v1759, %v1764
        %v1768 = vlaneseq
        %v1769 = vshrl.u32 %v1768, 7
        %v1770 = vsub.s32 0, %v1769
        %v1771 = vrot.slane %v1210, %v1770
        %v1773 = vadd.f32 %v1766, %v1771
        %v1774 = vmul.f32 %v1773, %v425
        %v1775 = vpack.c.bf16 %v1774, %v1774
        %v1776 = vld [vmem:[#allocation8 + $0x14] sm:$0xf]
        %v1777 = vld [vmem:[#allocation8 + $0x30] sm:$0xf]
        %v1778 = vld [vmem:[#allocation8 + $0x4c] sm:$0xf]
        %v1779 = vld [vmem:[#allocation8 + $0x68] sm:$0xf]
        %v1780 = vld [vmem:[%s6 + $0x9] sm:$0x1]
        %v1782 = vlaneseq
        %v1783 = vshrl.u32 %v1782, 7
        %v1784 = vsub.s32 0, %v1783
        %v1785 = vrot.slane %v1780, %v1784
        %v1791 = vunpack.c.l.b16 %v1776
        %v1792 = vunpack.c.l.b16 %v1777
        %v1793 = vunpack.c.l.b16 %v1778
        %v1794 = vunpack.c.l.b16 %v1779
        %v1795 = vpack.c.b16 %v1792, %v1791
        %v1796 = vpack.c.b16 %v1794, %v1793
        %v1800 = vsel %vm457, %v1775, 0
        %1802 = vmatprep.subr.bf16.mxu0 0
        %1803 = vmatpush1.bf16.msra.mxu0 %v1795
        %1804 = vmatprep.subr.bf16.mxu0 0
        %1805 = vmatpush1.bf16.msra.mxu0 %v1796
        %1806 = vmatprep.subr.bf16.mxu0 0
        %1807 = vmatpush1.bf16.msra.mxu0 0
        %1808 = vmatprep.subr.bf16.mxu0 0
        %1809 = vmatpush1.bf16.msra.mxu0 0
        %1810 = vmatprep.subr.bf16.mxu0 0
        %1811 = vmatpush1.bf16.msra.mxu0 0
        %1812 = vmatprep.subr.bf16.mxu0 0
        %1813 = vmatpush1.bf16.msra.mxu0 0
        %1814 = vmatprep.subr.bf16.mxu0 0
        %1815 = vmatpush1.bf16.msra.mxu0 0
        %1816 = vmatprep.subr.bf16.mxu0 0
        %1817 = vmatpush1.bf16.msra.mxu0 0
        %1818 = vmatprep.subr.bf16.mxu0 0
        %1819 = vmatpush1.bf16.msra.mxu0 0
        %1820 = vmatprep.subr.bf16.mxu0 0
        %1821 = vmatpush1.bf16.msra.mxu0 0
        %1822 = vmatprep.subr.bf16.mxu0 0
        %1823 = vmatpush1.bf16.msra.mxu0 0
        %1824 = vmatprep.subr.bf16.mxu0 0
        %1825 = vmatpush1.bf16.msra.mxu0 0
        %1826 = vmatprep.subr.bf16.mxu0 0
        %1827 = vmatpush1.bf16.msra.mxu0 0
        %1828 = vmatprep.subr.bf16.mxu0 0
        %1829 = vmatpush1.bf16.msra.mxu0 0
        %1830 = vmatprep.subr.bf16.mxu0 0
        %1831 = vmatpush1.bf16.msra.mxu0 0
        %1832 = vmatprep.subr.bf16.mxu0 0
        %1833 = vmatpush1.bf16.msra.mxu0 0
        %1834 = vmatprep.mubr.bf16.mxu0 0
        %1835 = vmatmul.mubr.bf16.gmra.mrb[0].mxu0 %v1800
        %v1836 = vpop.f32.mrb[0].mxu0
        %v1837 = vadd.f32 %v1785, %v1836
        %v1838 = vpop.f32.mrb[0].mxu0
        %v1839 = vpop.f32.mrb[0].mxu0
        %v1840 = vpop.f32.mrb[0].mxu0
        %1841 = vdwg.mxu0
        %v1842 = vmax.f32 %v1837, 0.0
        %v1843 = vpack.c.bf16 %v1842, %v1842
        %v1844 = vld [vmem:[#allocation8 + $0x18] sm:$0xf]
        %v1845 = vld [vmem:[#allocation8 + $0x34] sm:$0xf]
        %v1846 = vld [vmem:[#allocation8 + $0x50] sm:$0xf]
        %v1847 = vld [vmem:[#allocation8 + $0x6c] sm:$0xf]
        %v1848 = vld [vmem:[%s6 + $0xa] sm:$0x1]
        %v1850 = vlaneseq
        %v1851 = vshrl.u32 %v1850, 7
        %v1852 = vsub.s32 0, %v1851
        %v1853 = vrot.slane %v1848, %v1852
        %v1859 = vunpack.c.l.b16 %v1844
        %v1860 = vunpack.c.l.b16 %v1845
        %v1861 = vunpack.c.l.b16 %v1846
        %v1862 = vunpack.c.l.b16 %v1847
        %v1863 = vpack.c.b16 %v1860, %v1859
        %v1864 = vpack.c.b16 %v1862, %v1861
        %vm1865 = vcmask 523264
        %v1867 = vsel %vm1865, %v1843, 0
        %v1870 = vsel %vm1865, %v1863, 0
        %v1873 = vsel %vm1865, %v1864, 0
        %1875 = vmatprep.subr.bf16.mxu0 0
        %1876 = vmatpush1.bf16.xpose.msra.mxu0 %v1870
        %1877 = vmatprep.subr.bf16.mxu0 0
        %1878 = vmatpush1.bf16.xpose.msra.mxu0 %v1873
        %1879 = vmatprep.subr.bf16.mxu0 0
        %1880 = vmatpush1.bf16.xpose.msra.mxu0 0
        %1881 = vmatprep.subr.bf16.mxu0 0
        %1882 = vmatpush1.bf16.xpose.msra.mxu0 0
        %1883 = vmatprep.subr.bf16.mxu0 0
        %1884 = vmatpush1.bf16.xpose.msra.mxu0 0
        %1885 = vmatprep.subr.bf16.mxu0 0
        %1886 = vmatpush1.bf16.xpose.msra.mxu0 0
        %1887 = vmatprep.subr.bf16.mxu0 0
        %1888 = vmatpush1.bf16.xpose.msra.mxu0 0
        %1889 = vmatprep.subr.bf16.mxu0 0
        %1890 = vmatpush1.bf16.xpose.msra.mxu0 0
        %1891 = vmatprep.subr.bf16.mxu0 0
        %1892 = vmatpush1.bf16.xpose.msra.mxu0 0
        %1893 = vmatprep.subr.bf16.mxu0 0
        %1894 = vmatpush1.bf16.xpose.msra.mxu0 0
        %1895 = vmatprep.subr.bf16.mxu0 0
        %1896 = vmatpush1.bf16.xpose.msra.mxu0 0
        %1897 = vmatprep.subr.bf16.mxu0 0
        %1898 = vmatpush1.bf16.xpose.msra.mxu0 0
        %1899 = vmatprep.subr.bf16.mxu0 0
        %1900 = vmatpush1.bf16.xpose.msra.mxu0 0
        %1901 = vmatprep.subr.bf16.mxu0 0
        %1902 = vmatpush1.bf16.xpose.msra.mxu0 0
        %1903 = vmatprep.subr.bf16.mxu0 0
        %1904 = vmatpush1.bf16.xpose.msra.mxu0 0
        %1905 = vmatprep.subr.bf16.mxu0 0
        %1906 = vmatpush1.bf16.xpose.msra.mxu0 0
        %1907 = vmatprep.mubr.bf16.mxu0 0
        %1908 = vmatmul.mubr.bf16.gmra.mrb[0].mxu0 %v1867
        %v1909 = vpop.f32.mrb[0].mxu0
        %v1910 = vadd.f32 %v1853, %v1909
        %v1911 = vpop.f32.mrb[0].mxu0
        %v1912 = vpop.f32.mrb[0].mxu0
        %v1913 = vpop.f32.mrb[0].mxu0
        %1914 = vdwg.mxu0
        %v1915 = vadd.f32 %v1774, %v1910
        %v1916 = vld [vmem:[%s6 + $0xb] sm:$0x1]
        %v1917 = vld [vmem:[%s6 + $0xc] sm:$0x1]
        %v1918 = vsel %vm457, %v1915, 0.0
        %1919 = vadd.xlane.f32.xlu0 %v1918
        %v1920 = vpop.xlane.xlu0 %1919
        %v1921 = vmul.f32 %v1920, %v1043
        %v1922 = vsub.f32 %v1915, %v1921
        %v1923 = vmul.f32 %v1922, %v1922
        %v1924 = vsel %vm457, %v1923, 0.0
        %1925 = vadd.xlane.f32.xlu0 %v1924
        %v1926 = vpop.xlane.xlu0 %1925
        %v1927 = vmul.f32 %v1926, %v1043
        %v1928 = vadd.f32 %v1927, 1e-05
        %v1929 = vrsqrt.pop %v1928
        %v1930 = vmul.f32 %v1922, %v1929
        %v1932 = vlaneseq
        %v1933 = vshrl.u32 %v1932, 7
        %v1934 = vsub.s32 0, %v1933
        %v1935 = vrot.slane %v1916, %v1934
        %v1937 = vmul.f32 %v1930, %v1935
        %v1939 = vlaneseq
        %v1940 = vshrl.u32 %v1939, 7
        %v1941 = vsub.s32 0, %v1940
        %v1942 = vrot.slane %v1917, %v1941
        %v1944 = vadd.f32 %v1937, %v1942
        %v1945 = vmul.f32 %v1944, %v425
        %1946 = vst.msk [vmem:[%s408] sm:$0xff] %vm457, %v1945
        %s1947 = sand.u32 %s208, 1
        %s1948 = scalar_lea.sflag [#allocation4], %s1947
        %s1949 = sand.u32 %s208, 1
        %s1950 = smul.addr %s1949, 8
        %s1951 = scalar_lea.vmem [#allocation10], %s1950
        // Predicated region
        $region65: #{tpu_custom_call.1} parent=47 // pred_check
          %p1952 = pneg %p218
        $region66: #{tpu_custom_call.1} parent=47 // pred_check_branch
          %1954 = sbr.rel (%p1952) target = $region68
        $region67: #{tpu_custom_call.1} parent=47 // pred_region
          %s1956 = ssub.s32 128, 128
          %1957 = vsyncadd %s1948, %s1956
          %s1958 = smul.addr %s28, 128
          %s1959 = scalar_lea.hbm %s7, %s1958
          %s1961 = sshll.u32 %s1951, 4
          %s1962 = int_to_ptr.vmem [resolvable:$true] %s1961
          %1964 = dma.vmem_to_hbm [thread:$0]  %s1962, 128, %s1959, %s1948
        $region68: #{tpu_custom_call.1} parent=47 // pred_fallthru
          _
      $region48: #{tpu_custom_call.1} parent=5 // pred_fallthru
        _
      %p1965 = scmp.le.s32.totalorder 2, %s23
      // Predicated region
      $region69: #{tpu_custom_call.1} parent=5 // pred_check
        %p1966 = pneg %p1965
      $region70: #{tpu_custom_call.1} parent=5 // pred_check_branch
        %1968 = sbr.rel (%p1966) target = $region72
      $region71: #{tpu_custom_call.1} parent=5 // pred_region
        %s1969 = ssub.s32 %s23, 2
        // Predicated region
        $region73: #{tpu_custom_call.1} parent=71 // pred_check
          %p1970 = pneg %p224
        $region74: #{tpu_custom_call.1} parent=71 // pred_check_branch
          %1972 = sbr.rel (%p1970) target = $region76
        $region75: #{tpu_custom_call.1} parent=71 // pred_region
          %s1973 = sand.u32 %s209, 1
          %s1974 = scalar_lea.sflag [#allocation4], %s1973
          %s1975 = sand.u32 %s209, 1
          %s1976 = smul.addr %s1975, 8
          %s1977 = scalar_lea.vmem [#allocation10], %s1976
          %1978 = dma.done %s1974, 128
        $region76: #{tpu_custom_call.1} parent=71 // pred_fallthru
          _
      $region72: #{tpu_custom_call.1} parent=5 // pred_fallthru
        _
    $region6: #{tpu_custom_call.1} parent=1 // loop_footer
      %s27 = sadd.s32 1, %s23
    $region7: #{tpu_custom_call.1} parent=1 // loop_footer_branch
      %22 = sbr.rel target = $region3
    $region8: #{tpu_custom_call.1} parent=1 // loop_exit
      _
    %1979 = vsyncpa [#allocation3], 1
    %s1980 = scalar_lea.sflag [#allocation3], 1
    %1981 = vsyncpa %s1980, 1
    %1982 = vsyncpa [#allocation6], 1
    %s1983 = scalar_lea.sflag [#allocation6], 1
    %1984 = vsyncpa %s1983, 1
    %1985 = vsyncpa [#allocation9], 1
    %1986 = vsyncpa [#allocation4], 1
    %s1987 = scalar_lea.sflag [#allocation4], 1
    %1988 = vsyncpa %s1987, 1

</llo_original>
